<compile_context>
chip_gen: v5e
topology: v5e:2x2
jax: 0.10.0
libtpu: 0.0.40
codegen_flags: <defaults>
</compile_context>

<pallas_src>
import functools
import math

import jax
import jax.numpy as jnp
from jax.experimental import pallas as pl
from jax.experimental.pallas import tpu as pltpu

LN_EPS = 1e-5
_INV_SQRT2 = 0.7071067811865476
_SQRT_2_OVER_PI = 0.7978845608028654


def _converter_kernel(x_ref, lnp_ref, w1_ref, w2_ref, b1_ref, b2_ref,
                      o_ref, xln_ref, *, approx_gelu):
    """One (row-tile, col-tile) grid step.

    x_ref   : (tm, n)   input rows (full feature dim)
    lnp_ref : (2, n)    [gamma; beta]
    w1_ref  : (n, tn)   fc1 weight column tile (stored (in, out))
    w2_ref  : (n, tn)   fc2 weight column tile
    b1_ref  : (1, tn)   fc1 bias tile
    b2_ref  : (1, tn)   fc2 bias tile
    o_ref   : (tm, tn)  output tile
    xln_ref : (tm, n)   VMEM scratch holding LayerNorm(x) in matmul dtype,
                        written at the first column tile, reused afterwards.
    """
    j = pl.program_id(1)

    @pl.when(j == 0)
    def _():
        # LayerNorm over the feature dim; one-pass stats (sum, sum of squares).
        x = x_ref[...].astype(jnp.float32)                       # (tm, n)
        inv_n = 1.0 / x.shape[-1]
        mean = jnp.sum(x, axis=-1, keepdims=True) * inv_n
        mean_sq = jnp.sum(x * x, axis=-1, keepdims=True) * inv_n
        var = jnp.maximum(mean_sq - mean * mean, 0.0)
        xhat = (x - mean) * jax.lax.rsqrt(var + LN_EPS)
        gamma = lnp_ref[0:1, :]
        beta = lnp_ref[1:2, :]
        xln_ref[...] = (xhat * gamma + beta).astype(xln_ref.dtype)

    xln = xln_ref[...]                                            # (tm, n)

    # fc1 / fc2 column tiles on the MXU, f32 accumulation; bias in the epilogue.
    y1 = jnp.dot(xln, w1_ref[...], preferred_element_type=jnp.float32) + b1_ref[...]
    y2 = jnp.dot(xln, w2_ref[...], preferred_element_type=jnp.float32) + b2_ref[...]

    if approx_gelu:
        # tanh-approximate GELU: tanh lowers to the (otherwise idle) EUP slot.
        y2 = 0.5 * y2 * (1.0 + jnp.tanh(_SQRT_2_OVER_PI *
                                        (y2 + 0.044715 * y2 * y2 * y2)))
    else:
        # Exact erf GELU, matching torch.nn.GELU() default.
        y2 = 0.5 * y2 * (1.0 + jax.lax.erf(y2 * _INV_SQRT2))

    o_ref[...] = (y1 * y2).astype(o_ref.dtype)


def prepare_converter_params(gamma, beta, w1, b1, w2, b2, *, use_bf16_matmul=True):
    """Pack / cast the constant operands ONCE at init (not per forward call).

    w1/w2 are stored as (in, out), i.e. the transpose of torch Linear.weight,
    so the kernel computes x @ w + b directly.
    """
    mm_dtype = jnp.bfloat16 if use_bf16_matmul else jnp.float32
    n = w1.shape[0]
    return {
        "ln": jnp.stack([gamma, beta], axis=0).astype(jnp.float32),   # (2, n)
        "w1": w1.astype(mm_dtype),                                    # (n, n)
        "w2": w2.astype(mm_dtype),                                    # (n, n)
        "b1": b1.reshape(1, n).astype(jnp.float32),                   # (1, n)
        "b2": b2.reshape(1, n).astype(jnp.float32),                   # (1, n)
    }


def simple_embedding_converter(x, params, *, tile_rows=512, tile_cols=1024,
                               approx_gelu=False, out_dtype=None):
    """Fused LayerNorm -> (fc1, gelu(fc2)) -> elementwise product.  x: (..., n)."""
    n = x.shape[-1]
    lead = x.shape[:-1]
    rows = math.prod(lead) if lead else 1
    x2d = x.reshape(rows, n)
    out_dtype = x.dtype if out_dtype is None else jnp.dtype(out_dtype)
    mm_dtype = params["w1"].dtype

    # Row tile: multiple of 128 when possible (unmasked MXU / vst), multiple of
    # 8 otherwise; never exceeds the array -- the ragged tail is handled by
    # Pallas partial-block masking (no wrapper pad / slice).
    if rows >= 128:
        tm = min(max(128, (tile_rows // 128) * 128), (rows // 128) * 128)
    elif rows >= 8:
        tm = (rows // 8) * 8
    else:
        tm = rows

    # Column tile over the n output features: single tile for small n, 128-multiple
    # tiles for large n to cap weight / accumulator VMEM residency (v7x 64 MiB).
    if n <= tile_cols or n < 128:
        tn = n
    else:
        tn = max(128, (min(tile_cols, n) // 128) * 128)

    grid = (pl.cdiv(rows, tm), pl.cdiv(n, tn))
    weights_invariant = (grid[1] == 1)

    # Explicit VMEM budget.
    def nbytes(shape, dtype):
        return math.prod(shape) * jnp.dtype(dtype).itemsize

    w_bufs = 1 if weights_invariant else 2
    est = (2 * nbytes((tm, n), x2d.dtype)              # x tile, double-buffered
           + 2 * nbytes((tm, tn), out_dtype)           # out tile, double-buffered
           + nbytes((2, n), jnp.float32)               # gamma/beta
           + 2 * w_bufs * nbytes((n, tn), mm_dtype)    # w1 + w2
           + 2 * w_bufs * nbytes((1, tn), jnp.float32) # b1 + b2
           + nbytes((tm, n), mm_dtype))                # xln scratch
    vmem_limit = int(min(max(est + (8 << 20), 32 << 20), 128 << 20))

    kernel = functools.partial(_converter_kernel, approx_gelu=approx_gelu)

    def build_and_run(single_buffer_constants):
        def spec(shape, index_map, invariant=False):
            if single_buffer_constants and invariant:
                # Grid-invariant operand: one VMEM buffer is enough.
                return pl.BlockSpec(shape, index_map, pipeline_mode=pl.Buffered(1))
            return pl.BlockSpec(shape, index_map)

        return pl.pallas_call(
            kernel,
            out_shape=jax.ShapeDtypeStruct((rows, n), out_dtype),
            grid=grid,
            in_specs=[
                spec((tm, n), lambda i, j: (i, 0)),                        # x rows
                spec((2, n), lambda i, j: (0, 0), invariant=True),         # [gamma; beta]
                spec((n, tn), lambda i, j: (0, j), invariant=weights_invariant),  # W1
                spec((n, tn), lambda i, j: (0, j), invariant=weights_invariant),  # W2
                spec((1, tn), lambda i, j: (0, j), invariant=weights_invariant),  # b1
                spec((1, tn), lambda i, j: (0, j), invariant=weights_invariant),  # b2
            ],
            out_specs=pl.BlockSpec((tm, tn), lambda i, j: (i, j)),
            scratch_shapes=[pltpu.VMEM((tm, n), mm_dtype)],
            compiler_params=pltpu.CompilerParams(
                dimension_semantics=("parallel", "arbitrary"),
                vmem_limit_bytes=vmem_limit,
            ),
        )(x2d, params["ln"], params["w1"], params["w2"], params["b1"], params["b2"])

    try:
        out2d = build_and_run(True)
    except Exception:
        # Fallback for jax versions without Buffered(1) single-buffer lowering.
        out2d = build_and_run(False)

    return out2d.reshape(*lead, n)


def _reference(x, gamma, beta, w1, b1, w2, b2):
    mean = jnp.mean(x, axis=-1, keepdims=True)
    var = jnp.mean((x - mean) ** 2, axis=-1, keepdims=True)
    xln = (x - mean) * jax.lax.rsqrt(var + LN_EPS) * gamma + beta
    y1 = xln @ w1 + b1
    y2 = xln @ w2 + b2
    y2 = 0.5 * y2 * (1.0 + jax.lax.erf(y2 * _INV_SQRT2))
    return y1 * y2


if __name__ == "__main__":
    batch, seq, n = 2, 8, 256

    key = jax.random.PRNGKey(0)
    kx, kg, kb, kw1, kb1, kw2, kb2, kx2 = jax.random.split(key, 8)

    x = jax.random.normal(kx, (batch, seq, n), dtype=jnp.float32)

    # LayerNorm affine params (randomized to exercise the affine path).
    gamma = 1.0 + 0.1 * jax.random.normal(kg, (n,), dtype=jnp.float32)
    beta = 0.1 * jax.random.normal(kb, (n,), dtype=jnp.float32)

    # Linear params; torch Linear weight is (out, in) -> stored transposed (in, out).
    bound = 1.0 / math.sqrt(n)
    w1 = jax.random.uniform(kw1, (n, n), jnp.float32, -bound, bound)
    b1 = jax.random.uniform(kb1, (n,), jnp.float32, -bound, bound)
    w2 = jax.random.uniform(kw2, (n, n), jnp.float32, -bound, bound)
    b2 = jax.random.uniform(kb2, (n,), jnp.float32, -bound, bound)

    ref = _reference(x, gamma, beta, w1, b1, w2, b2)

    # Exact-math path: f32 matmul + erf GELU, tight tolerance vs torch-equivalent ref.
    params_f32 = prepare_converter_params(gamma, beta, w1, b1, w2, b2,
                                          use_bf16_matmul=False)
    out = jax.block_until_ready(simple_embedding_converter(x, params_f32))
    assert out.shape == (batch, seq, n)
    assert jnp.allclose(out, ref, atol=1e-4, rtol=1e-4), "f32 path mismatch"

    # Ragged row count (rows % tile != 0): exercises partial-last-block masking
    # in place of the removed wrapper pad/slice.
    x_odd = jax.random.normal(kx2, (3, 5, n), dtype=jnp.float32)
    ref_odd = _reference(x_odd, gamma, beta, w1, b1, w2, b2)
    out_odd = jax.block_until_ready(simple_embedding_converter(x_odd, params_f32))
    assert out_odd.shape == (3, 5, n)
    assert jnp.allclose(out_odd, ref_odd, atol=1e-4, rtol=1e-4), "ragged rows mismatch"

    # bf16-matmul fast path (f32 accumulation on the MXU).
    params_bf16 = prepare_converter_params(gamma, beta, w1, b1, w2, b2,
                                           use_bf16_matmul=True)
    out_bf16 = jax.block_until_ready(simple_embedding_converter(x, params_bf16))
    assert jnp.allclose(out_bf16, ref, atol=2e-2, rtol=2e-2), "bf16 path mismatch"

    # tanh-approximate GELU (EUP path) behind a flag; slightly looser tolerance.
    out_tanh = jax.block_until_ready(
        simple_embedding_converter(x, params_f32, approx_gelu=True))
    assert jnp.allclose(out_tanh, ref, atol=1e-2, rtol=1e-2), "approx-gelu mismatch"

    print("KERNEL_OK")
</pallas_src>

<mosaic_0001>
module attributes {stable_mosaic.version = 11 : i64} {
  func.func @_converter_kernel(%arg0: i32, %arg1: i32, %arg2: memref<16x256xf32, #tpu.memory_space<vmem>>, %arg3: memref<2x256xf32, #tpu.memory_space<vmem>>, %arg4: memref<256x256xf32, #tpu.memory_space<vmem>>, %arg5: memref<256x256xf32, #tpu.memory_space<vmem>>, %arg6: memref<1x256xf32, #tpu.memory_space<vmem>>, %arg7: memref<1x256xf32, #tpu.memory_space<vmem>>, %arg8: memref<16x256xf32, #tpu.memory_space<vmem>>, %arg9: memref<16x256xf32, #tpu.memory_space<vmem>>) attributes {dimension_semantics = [#tpu.dimension_semantics<parallel>, #tpu.dimension_semantics<arbitrary>], iteration_bounds = array<i64: 1, 1>, scalar_prefetch = 0 : i64, scratch_operands = 1 : i64, tpu.core_type = #tpu.core_type<tc>, window_params = [{transform_indices = @transform_0, window_bounds = array<i64: 16, 256>}, {pipeline_mode = #tpu.pipeline_mode<synchronous>, transform_indices = @transform_1, window_bounds = array<i64: 2, 256>}, {pipeline_mode = #tpu.pipeline_mode<synchronous>, transform_indices = @transform_2, window_bounds = array<i64: 256, 256>}, {pipeline_mode = #tpu.pipeline_mode<synchronous>, transform_indices = @transform_3, window_bounds = array<i64: 256, 256>}, {pipeline_mode = #tpu.pipeline_mode<synchronous>, transform_indices = @transform_4, window_bounds = array<i64: 1, 256>}, {pipeline_mode = #tpu.pipeline_mode<synchronous>, transform_indices = @transform_5, window_bounds = array<i64: 1, 256>}, {transform_indices = @transform_6, window_bounds = array<i64: 16, 256>}]} {
    %c0_i32 = arith.constant 0 : i32
    %0 = arith.cmpi eq, %arg1, %c0_i32 : i32
    %1 = arith.extui %0 : i1 to i32
    %c0_i32_0 = arith.constant 0 : i32
    %2 = arith.cmpi ne, %1, %c0_i32_0 : i32
    scf.if %2 {
      %c0_16 = arith.constant 0 : index
      %c0_17 = arith.constant 0 : index
      %24 = vector.load %arg2[%c0_16, %c0_17] : memref<16x256xf32, #tpu.memory_space<vmem>>, vector<16x256xf32>
      %cst_18 = arith.constant dense<0.000000e+00> : vector<16xf32>
      %25 = vector.multi_reduction <add>, %24, %cst_18 [1] : vector<16x256xf32> to vector<16xf32>
      %26 = vector.shape_cast %25 : vector<16xf32> to vector<16x1xf32>
      %cst_19 = arith.constant 3.906250e-03 : f32
      %27 = vector.broadcast %cst_19 : f32 to vector<16x1xf32>
      %28 = arith.mulf %26, %27 : vector<16x1xf32>
      %29 = arith.mulf %24, %24 : vector<16x256xf32>
      %cst_20 = arith.constant dense<0.000000e+00> : vector<16xf32>
      %30 = vector.multi_reduction <add>, %29, %cst_20 [1] : vector<16x256xf32> to vector<16xf32>
      %31 = vector.shape_cast %30 : vector<16xf32> to vector<16x1xf32>
      %cst_21 = arith.constant 3.906250e-03 : f32
      %32 = vector.broadcast %cst_21 : f32 to vector<16x1xf32>
      %33 = arith.mulf %31, %32 : vector<16x1xf32>
      %34 = arith.mulf %28, %28 : vector<16x1xf32>
      %35 = arith.subf %33, %34 : vector<16x1xf32>
      %cst_22 = arith.constant 0.000000e+00 : f32
      %36 = vector.broadcast %cst_22 : f32 to vector<16x1xf32>
      %37 = arith.maximumf %35, %36 : vector<16x1xf32>
      %38 = vector.broadcast %28 : vector<16x1xf32> to vector<16x256xf32>
      %39 = arith.subf %24, %38 : vector<16x256xf32>
      %cst_23 = arith.constant 9.99999974E-6 : f32
      %40 = vector.broadcast %cst_23 : f32 to vector<16x1xf32>
      %41 = arith.addf %37, %40 : vector<16x1xf32>
      %42 = math.rsqrt %41 : vector<16x1xf32>
      %43 = vector.broadcast %42 : vector<16x1xf32> to vector<16x256xf32>
      %44 = arith.mulf %39, %43 : vector<16x256xf32>
      %c0_24 = arith.constant 0 : index
      %c0_25 = arith.constant 0 : index
      %45 = vector.load %arg3[%c0_24, %c0_25] : memref<2x256xf32, #tpu.memory_space<vmem>>, vector<1x256xf32>
      %c1 = arith.constant 1 : index
      %c0_26 = arith.constant 0 : index
      %46 = vector.load %arg3[%c1, %c0_26] : memref<2x256xf32, #tpu.memory_space<vmem>>, vector<1x256xf32>
      %47 = vector.broadcast %45 : vector<1x256xf32> to vector<16x256xf32>
      %48 = arith.mulf %44, %47 : vector<16x256xf32>
      %49 = vector.broadcast %46 : vector<1x256xf32> to vector<16x256xf32>
      %50 = arith.addf %48, %49 : vector<16x256xf32>
      %c0_27 = arith.constant 0 : index
      %c0_28 = arith.constant 0 : index
      %51 = vector.load %arg9[%c0_27, %c0_28] : memref<16x256xf32, #tpu.memory_space<vmem>>, vector<16x256xf32>
      tpu.vector_store %arg9[%c0_27, %c0_28], %50 {strides = array<i32>} : memref<16x256xf32, #tpu.memory_space<vmem>>, vector<16x256xf32>,
    } else {
    }
    %c0 = arith.constant 0 : index
    %c0_1 = arith.constant 0 : index
    %3 = vector.load %arg9[%c0, %c0_1] : memref<16x256xf32, #tpu.memory_space<vmem>>, vector<16x256xf32>
    %c0_2 = arith.constant 0 : index
    %c0_3 = arith.constant 0 : index
    %4 = vector.load %arg4[%c0_2, %c0_3] : memref<256x256xf32, #tpu.memory_space<vmem>>, vector<256x256xf32>
    %cst = arith.constant dense<0.000000e+00> : vector<16x256xf32>
    %5 = tpu.matmul %3, %4, %cst {dimension_numbers = #tpu.dot_dimension_numbers<[1], [0], [0], [1], [0, 0, 1, 1], [], []>} : vector<16x256xf32>, vector<256x256xf32>, vector<16x256xf32> -> vector<16x256xf32>
    %c0_4 = arith.constant 0 : index
    %c0_5 = arith.constant 0 : index
    %6 = vector.load %arg6[%c0_4, %c0_5] : memref<1x256xf32, #tpu.memory_space<vmem>>, vector<1x256xf32>
    %7 = vector.broadcast %6 : vector<1x256xf32> to vector<16x256xf32>
    %8 = arith.addf %5, %7 : vector<16x256xf32>
    %c0_6 = arith.constant 0 : index
    %c0_7 = arith.constant 0 : index
    %9 = vector.load %arg5[%c0_6, %c0_7] : memref<256x256xf32, #tpu.memory_space<vmem>>, vector<256x256xf32>
    %cst_8 = arith.constant dense<0.000000e+00> : vector<16x256xf32>
    %10 = tpu.matmul %3, %9, %cst_8 {dimension_numbers = #tpu.dot_dimension_numbers<[1], [0], [0], [1], [0, 0, 1, 1], [], []>} : vector<16x256xf32>, vector<256x256xf32>, vector<16x256xf32> -> vector<16x256xf32>
    %c0_9 = arith.constant 0 : index
    %c0_10 = arith.constant 0 : index
    %11 = vector.load %arg7[%c0_9, %c0_10] : memref<1x256xf32, #tpu.memory_space<vmem>>, vector<1x256xf32>
    %12 = vector.broadcast %11 : vector<1x256xf32> to vector<16x256xf32>
    %13 = arith.addf %10, %12 : vector<16x256xf32>
    %cst_11 = arith.constant 5.000000e-01 : f32
    %14 = vector.broadcast %cst_11 : f32 to vector<16x256xf32>
    %15 = arith.mulf %14, %13 : vector<16x256xf32>
    %cst_12 = arith.constant 0.707106769 : f32
    %16 = vector.broadcast %cst_12 : f32 to vector<16x256xf32>
    %17 = arith.mulf %13, %16 : vector<16x256xf32>
    %18 = math.erf %17 : vector<16x256xf32>
    %cst_13 = arith.constant 1.000000e+00 : f32
    %19 = vector.broadcast %cst_13 : f32 to vector<16x256xf32>
    %20 = arith.addf %19, %18 : vector<16x256xf32>
    %21 = arith.mulf %15, %20 : vector<16x256xf32>
    %22 = arith.mulf %8, %21 : vector<16x256xf32>
    %c0_14 = arith.constant 0 : index
    %c0_15 = arith.constant 0 : index
    %23 = vector.load %arg8[%c0_14, %c0_15] : memref<16x256xf32, #tpu.memory_space<vmem>>, vector<16x256xf32>
    tpu.vector_store %arg8[%c0_14, %c0_15], %22 {strides = array<i32>} : memref<16x256xf32, #tpu.memory_space<vmem>>, vector<16x256xf32>,
    return
  }
  func.func @transform_0(%arg0: i32, %arg1: i32) -> (i32, i32) {
    %c0_i32 = arith.constant 0 : i32
    %c0_i32_0 = arith.constant 0 : i32
    return %arg0, %c0_i32 : i32, i32
  }
  func.func @transform_1(%arg0: i32, %arg1: i32) -> (i32, i32) {
    %c0_i32 = arith.constant 0 : i32
    %c0_i32_0 = arith.constant 0 : i32
    %c0_i32_1 = arith.constant 0 : i32
    return %c0_i32, %c0_i32_0 : i32, i32
  }
  func.func @transform_2(%arg0: i32, %arg1: i32) -> (i32, i32) {
    %c0_i32 = arith.constant 0 : i32
    %c0_i32_0 = arith.constant 0 : i32
    return %c0_i32, %arg1 : i32, i32
  }
  func.func @transform_3(%arg0: i32, %arg1: i32) -> (i32, i32) {
    %c0_i32 = arith.constant 0 : i32
    %c0_i32_0 = arith.constant 0 : i32
    return %c0_i32, %arg1 : i32, i32
  }
  func.func @transform_4(%arg0: i32, %arg1: i32) -> (i32, i32) {
    %c0_i32 = arith.constant 0 : i32
    %c0_i32_0 = arith.constant 0 : i32
    return %c0_i32, %arg1 : i32, i32
  }
  func.func @transform_5(%arg0: i32, %arg1: i32) -> (i32, i32) {
    %c0_i32 = arith.constant 0 : i32
    %c0_i32_0 = arith.constant 0 : i32
    return %c0_i32, %arg1 : i32, i32
  }
  func.func @transform_6(%arg0: i32, %arg1: i32) -> (i32, i32) {
    %c0_i32 = arith.constant 0 : i32
    return %arg0, %arg1 : i32, i32
  }
}

module attributes {stable_mosaic.version = 11 : i64} {
  func.func @_converter_kernel(%arg0: i32, %arg1: i32, %arg2: memref<16x256xf32, #tpu.memory_space<vmem>>, %arg3: memref<2x256xf32, #tpu.memory_space<vmem>>, %arg4: memref<256x256xf32, #tpu.memory_space<vmem>>, %arg5: memref<256x256xf32, #tpu.memory_space<vmem>>, %arg6: memref<1x256xf32, #tpu.memory_space<vmem>>, %arg7: memref<1x256xf32, #tpu.memory_space<vmem>>, %arg8: memref<16x256xf32, #tpu.memory_space<vmem>>, %arg9: memref<16x256xf32, #tpu.memory_space<vmem>>) attributes {dimension_semantics = [#tpu.dimension_semantics<parallel>, #tpu.dimension_semantics<arbitrary>], iteration_bounds = array<i64: 1, 1>, scalar_prefetch = 0 : i64, scratch_operands = 1 : i64, tpu.core_type = #tpu.core_type<tc>, window_params = [{transform_indices = @transform_0, window_bounds = array<i64: 16, 256>}, {pipeline_mode = #tpu.pipeline_mode<synchronous>, transform_indices = @transform_1, window_bounds = array<i64: 2, 256>}, {transform_indices = @transform_2, window_bounds = array<i64: 256, 256>}, {transform_indices = @transform_3, window_bounds = array<i64: 256, 256>}, {transform_indices = @transform_4, window_bounds = array<i64: 1, 256>}, {transform_indices = @transform_5, window_bounds = array<i64: 1, 256>}, {transform_indices = @transform_6, window_bounds = array<i64: 16, 256>}]} {
    %c0_i32 = arith.constant 0 : i32
    %0 = arith.cmpi eq, %arg1, %c0_i32 : i32
    %1 = arith.extui %0 : i1 to i32
    %c0_i32_0 = arith.constant 0 : i32
    %2 = arith.cmpi ne, %1, %c0_i32_0 : i32
    scf.if %2 {
      %c0_16 = arith.constant 0 : index
      %c0_17 = arith.constant 0 : index
      %24 = vector.load %arg2[%c0_16, %c0_17] : memref<16x256xf32, #tpu.memory_space<vmem>>, vector<16x256xf32>
      %cst_18 = arith.constant dense<0.000000e+00> : vector<16xf32>
      %25 = vector.multi_reduction <add>, %24, %cst_18 [1] : vector<16x256xf32> to vector<16xf32>
      %26 = vector.shape_cast %25 : vector<16xf32> to vector<16x1xf32>
      %cst_19 = arith.constant 3.906250e-03 : f32
      %27 = vector.broadcast %cst_19 : f32 to vector<16x1xf32>
      %28 = arith.mulf %26, %27 : vector<16x1xf32>
      %29 = arith.mulf %24, %24 : vector<16x256xf32>
      %cst_20 = arith.constant dense<0.000000e+00> : vector<16xf32>
      %30 = vector.multi_reduction <add>, %29, %cst_20 [1] : vector<16x256xf32> to vector<16xf32>
      %31 = vector.shape_cast %30 : vector<16xf32> to vector<16x1xf32>
      %cst_21 = arith.constant 3.906250e-03 : f32
      %32 = vector.broadcast %cst_21 : f32 to vector<16x1xf32>
      %33 = arith.mulf %31, %32 : vector<16x1xf32>
      %34 = arith.mulf %28, %28 : vector<16x1xf32>
      %35 = arith.subf %33, %34 : vector<16x1xf32>
      %cst_22 = arith.constant 0.000000e+00 : f32
      %36 = vector.broadcast %cst_22 : f32 to vector<16x1xf32>
      %37 = arith.maximumf %35, %36 : vector<16x1xf32>
      %38 = vector.broadcast %28 : vector<16x1xf32> to vector<16x256xf32>
      %39 = arith.subf %24, %38 : vector<16x256xf32>
      %cst_23 = arith.constant 9.99999974E-6 : f32
      %40 = vector.broadcast %cst_23 : f32 to vector<16x1xf32>
      %41 = arith.addf %37, %40 : vector<16x1xf32>
      %42 = math.rsqrt %41 : vector<16x1xf32>
      %43 = vector.broadcast %42 : vector<16x1xf32> to vector<16x256xf32>
      %44 = arith.mulf %39, %43 : vector<16x256xf32>
      %c0_24 = arith.constant 0 : index
      %c0_25 = arith.constant 0 : index
      %45 = vector.load %arg3[%c0_24, %c0_25] : memref<2x256xf32, #tpu.memory_space<vmem>>, vector<1x256xf32>
      %c1 = arith.constant 1 : index
      %c0_26 = arith.constant 0 : index
      %46 = vector.load %arg3[%c1, %c0_26] : memref<2x256xf32, #tpu.memory_space<vmem>>, vector<1x256xf32>
      %47 = vector.broadcast %45 : vector<1x256xf32> to vector<16x256xf32>
      %48 = arith.mulf %44, %47 : vector<16x256xf32>
      %49 = vector.broadcast %46 : vector<1x256xf32> to vector<16x256xf32>
      %50 = arith.addf %48, %49 : vector<16x256xf32>
      %c0_27 = arith.constant 0 : index
      %c0_28 = arith.constant 0 : index
      %51 = vector.load %arg9[%c0_27, %c0_28] : memref<16x256xf32, #tpu.memory_space<vmem>>, vector<16x256xf32>
      tpu.vector_store %arg9[%c0_27, %c0_28], %50 {strides = array<i32>} : memref<16x256xf32, #tpu.memory_space<vmem>>, vector<16x256xf32>,
    } else {
    }
    %c0 = arith.constant 0 : index
    %c0_1 = arith.constant 0 : index
    %3 = vector.load %arg9[%c0, %c0_1] : memref<16x256xf32, #tpu.memory_space<vmem>>, vector<16x256xf32>
    %c0_2 = arith.constant 0 : index
    %c0_3 = arith.constant 0 : index
    %4 = vector.load %arg4[%c0_2, %c0_3] : memref<256x256xf32, #tpu.memory_space<vmem>>, vector<256x256xf32>
    %cst = arith.constant dense<0.000000e+00> : vector<16x256xf32>
    %5 = tpu.matmul %3, %4, %cst {dimension_numbers = #tpu.dot_dimension_numbers<[1], [0], [0], [1], [0, 0, 1, 1], [], []>} : vector<16x256xf32>, vector<256x256xf32>, vector<16x256xf32> -> vector<16x256xf32>
    %c0_4 = arith.constant 0 : index
    %c0_5 = arith.constant 0 : index
    %6 = vector.load %arg6[%c0_4, %c0_5] : memref<1x256xf32, #tpu.memory_space<vmem>>, vector<1x256xf32>
    %7 = vector.broadcast %6 : vector<1x256xf32> to vector<16x256xf32>
    %8 = arith.addf %5, %7 : vector<16x256xf32>
    %c0_6 = arith.constant 0 : index
    %c0_7 = arith.constant 0 : index
    %9 = vector.load %arg5[%c0_6, %c0_7] : memref<256x256xf32, #tpu.memory_space<vmem>>, vector<256x256xf32>
    %cst_8 = arith.constant dense<0.000000e+00> : vector<16x256xf32>
    %10 = tpu.matmul %3, %9, %cst_8 {dimension_numbers = #tpu.dot_dimension_numbers<[1], [0], [0], [1], [0, 0, 1, 1], [], []>} : vector<16x256xf32>, vector<256x256xf32>, vector<16x256xf32> -> vector<16x256xf32>
    %c0_9 = arith.constant 0 : index
    %c0_10 = arith.constant 0 : index
    %11 = vector.load %arg7[%c0_9, %c0_10] : memref<1x256xf32, #tpu.memory_space<vmem>>, vector<1x256xf32>
    %12 = vector.broadcast %11 : vector<1x256xf32> to vector<16x256xf32>
    %13 = arith.addf %10, %12 : vector<16x256xf32>
    %cst_11 = arith.constant 5.000000e-01 : f32
    %14 = vector.broadcast %cst_11 : f32 to vector<16x256xf32>
    %15 = arith.mulf %14, %13 : vector<16x256xf32>
    %cst_12 = arith.constant 0.707106769 : f32
    %16 = vector.broadcast %cst_12 : f32 to vector<16x256xf32>
    %17 = arith.mulf %13, %16 : vector<16x256xf32>
    %18 = math.erf %17 : vector<16x256xf32>
    %cst_13 = arith.constant 1.000000e+00 : f32
    %19 = vector.broadcast %cst_13 : f32 to vector<16x256xf32>
    %20 = arith.addf %19, %18 : vector<16x256xf32>
    %21 = arith.mulf %15, %20 : vector<16x256xf32>
    %22 = arith.mulf %8, %21 : vector<16x256xf32>
    %c0_14 = arith.constant 0 : index
    %c0_15 = arith.constant 0 : index
    %23 = vector.load %arg8[%c0_14, %c0_15] : memref<16x256xf32, #tpu.memory_space<vmem>>, vector<16x256xf32>
    tpu.vector_store %arg8[%c0_14, %c0_15], %22 {strides = array<i32>} : memref<16x256xf32, #tpu.memory_space<vmem>>, vector<16x256xf32>,
    return
  }
  func.func @transform_0(%arg0: i32, %arg1: i32) -> (i32, i32) {
    %c0_i32 = arith.constant 0 : i32
    %c0_i32_0 = arith.constant 0 : i32
    return %arg0, %c0_i32 : i32, i32
  }
  func.func @transform_1(%arg0: i32, %arg1: i32) -> (i32, i32) {
    %c0_i32 = arith.constant 0 : i32
    %c0_i32_0 = arith.constant 0 : i32
    %c0_i32_1 = arith.constant 0 : i32
    return %c0_i32, %c0_i32_0 : i32, i32
  }
  func.func @transform_2(%arg0: i32, %arg1: i32) -> (i32, i32) {
    %c0_i32 = arith.constant 0 : i32
    %c0_i32_0 = arith.constant 0 : i32
    return %c0_i32, %arg1 : i32, i32
  }
  func.func @transform_3(%arg0: i32, %arg1: i32) -> (i32, i32) {
    %c0_i32 = arith.constant 0 : i32
    %c0_i32_0 = arith.constant 0 : i32
    return %c0_i32, %arg1 : i32, i32
  }
  func.func @transform_4(%arg0: i32, %arg1: i32) -> (i32, i32) {
    %c0_i32 = arith.constant 0 : i32
    %c0_i32_0 = arith.constant 0 : i32
    return %c0_i32, %arg1 : i32, i32
  }
  func.func @transform_5(%arg0: i32, %arg1: i32) -> (i32, i32) {
    %c0_i32 = arith.constant 0 : i32
    %c0_i32_0 = arith.constant 0 : i32
    return %c0_i32, %arg1 : i32, i32
  }
  func.func @transform_6(%arg0: i32, %arg1: i32) -> (i32, i32) {
    %c0_i32 = arith.constant 0 : i32
    return %arg0, %arg1 : i32, i32
  }
}

</mosaic_0001>

<llo_original>
// kernel: tpu_custom_call.1
$region0: #{tpu_custom_call.1}
  #allocation0 [shape = 'u32[]', space=smem, size = 0x4, offset = 0x4, fixed_abs, tag = 'smem constant byte address 0x4 - core index']
  #allocation1 [shape = 'u32[72,128]{1,0:T(1,128)}', space=vmem, size = 0x9000, scoped, tag = 'internal scratch']
  #allocation2 [shape = 'f32[16,256]{1,0:T(8,128)}', space=vmem, size = 0x4000, scoped, tag = 'scratch operand']
  %s0 = inlined_call_operand.hbm [shape: f32[16,256], index: 0, kind: input, shape index: {}]
  %s1 = inlined_call_operand.hbm [shape: f32[2,256], index: 1, kind: input, shape index: {}]
  %s2 = inlined_call_operand.hbm [shape: f32[256,256], index: 2, kind: input, shape index: {}]
  %s3 = inlined_call_operand.hbm [shape: f32[256,256], index: 3, kind: input, shape index: {}]
  %s4 = inlined_call_operand.vmem [shape: f32[1,256], index: 4, kind: input, shape index: {}]
  %s5 = inlined_call_operand.vmem [shape: f32[1,256], index: 5, kind: input, shape index: {}]
  %s6 = inlined_call_operand.hbm [shape: f32[16,256], index: 6, kind: output, shape index: {}]
  %s7 = sld [smem:[#allocation0]]
  $region54: #{tpu_custom_call.1} parent=0
    _
  %s9 = ssub.s32 1, %s7
  %s10 = scalar_select 0, %s9, %s7
  $region1: #{tpu_custom_call.1} parent=0
    #allocation3 [shape = 'u8[16384]{0}', space=vmem, size = 0x4000, scoped, tag = 'input window, operand 0, single buffered']
    #allocation4 [shape = 's32[1]{0}', space=sflag, size = 0x4, scoped, tag = 'scoped memory for tpu_custom_call.1']
    #allocation5 [shape = 's32[1]{0}', space=sflag, size = 0x4, scoped, tag = 'scoped memory for tpu_custom_call.1']
    #allocation6 [shape = 'u8[2048]{0}', space=vmem, size = 0x800, scoped, tag = 'input window, operand 1, single buffered']
    #allocation7 [shape = 's32[1]{0}', space=sflag, size = 0x4, scoped, tag = 'scoped memory for tpu_custom_call.1']
    #allocation8 [shape = 'u8[262144]{0}', space=vmem, size = 0x40000, scoped, tag = 'input window, operand 2, single buffered']
    #allocation9 [shape = 'u8[262144]{0}', space=vmem, size = 0x40000, scoped, tag = 'input window, operand 3, single buffered']
    #allocation10 [shape = 's32[1]{0}', space=sflag, size = 0x4, scoped, tag = 'scoped memory for tpu_custom_call.1']
    #allocation11 [shape = 'u8[16384]{0}', space=vmem, size = 0x4000, scoped, tag = 'output window, operand 0, single buffered']
    %11 = vsyncpa [#allocation4], 0
    %12 = vsyncpa [#allocation7], 0
    %13 = vsyncpa [#allocation10], 0
    %14 = vsyncpa [#allocation5], 0
    // Predicated region
    $region2: #{tpu_custom_call.1} parent=1 // pred_check
      _
    $region3: #{tpu_custom_call.1} parent=1 // pred_check_branch
      %16 = sbr.rel (0) target = $region5
    $region4: #{tpu_custom_call.1} parent=1 // pred_region
      %18 = vsyncadd [#allocation4], 0
      %s19 = sshll.u32 %s0, 4
      %s20 = int_to_ptr.hbm [resolvable:$true] %s19
      %s21 = sshll.u32 [#allocation3], 4
      %s22 = int_to_ptr.vmem [resolvable:$true] %s21
      %27 = dma.hbm_to_vmem [thread:$0]  %s20, 512, %s22, [#allocation4], 256, 256, 16
    $region5: #{tpu_custom_call.1} parent=1 // pred_fallthru
      _
    // Predicated region
    $region6: #{tpu_custom_call.1} parent=1 // pred_check
      _
    $region7: #{tpu_custom_call.1} parent=1 // pred_check_branch
      %29 = sbr.rel (0) target = $region9
    $region8: #{tpu_custom_call.1} parent=1 // pred_region
      %31 = vsyncadd [#allocation7], 0
      %s33 = sshll.u32 %s1, 4
      %s34 = int_to_ptr.hbm [resolvable:$true] %s33
      %s35 = sshll.u32 [#allocation6], 4
      %s36 = int_to_ptr.vmem [resolvable:$true] %s35
      %38 = dma.hbm_to_vmem [thread:$0]  %s34, 64, %s36, [#allocation7]
    $region9: #{tpu_custom_call.1} parent=1 // pred_fallthru
      _
    // Predicated region
    $region10: #{tpu_custom_call.1} parent=1 // pred_check
      _
    $region11: #{tpu_custom_call.1} parent=1 // pred_check_branch
      %40 = sbr.rel (0) target = $region13
    $region12: #{tpu_custom_call.1} parent=1 // pred_region
      %42 = vsyncadd [#allocation7], 0
      %s43 = sshll.u32 %s2, 4
      %s44 = int_to_ptr.hbm [resolvable:$true] %s43
      %s45 = sshll.u32 [#allocation8], 4
      %s46 = int_to_ptr.vmem [resolvable:$true] %s45
      %51 = dma.hbm_to_vmem [thread:$0]  %s44, 8192, %s46, [#allocation7], 256, 256, 16
    $region13: #{tpu_custom_call.1} parent=1 // pred_fallthru
      _
    // Predicated region
    $region14: #{tpu_custom_call.1} parent=1 // pred_check
      _
    $region15: #{tpu_custom_call.1} parent=1 // pred_check_branch
      %53 = sbr.rel (0) target = $region17
    $region16: #{tpu_custom_call.1} parent=1 // pred_region
      %55 = vsyncadd [#allocation10], 0
      %s56 = sshll.u32 %s3, 4
      %s57 = int_to_ptr.hbm [resolvable:$true] %s56
      %s58 = sshll.u32 [#allocation9], 4
      %s59 = int_to_ptr.vmem [resolvable:$true] %s58
      %64 = dma.hbm_to_vmem [thread:$0]  %s57, 8192, %s59, [#allocation10], 256, 256, 16
    $region17: #{tpu_custom_call.1} parent=1 // pred_fallthru
      _
    // Predicated region
    $region18: #{tpu_custom_call.1} parent=1 // pred_check
      _
    $region19: #{tpu_custom_call.1} parent=1 // pred_check_branch
      %66 = sbr.rel (0) target = $region21
    $region20: #{tpu_custom_call.1} parent=1 // pred_region
      _
    $region21: #{tpu_custom_call.1} parent=1 // pred_fallthru
      _
    // Predicated region
    $region22: #{tpu_custom_call.1} parent=1 // pred_check
      _
    $region23: #{tpu_custom_call.1} parent=1 // pred_check_branch
      %68 = sbr.rel (0) target = $region25
    $region24: #{tpu_custom_call.1} parent=1 // pred_region
      _
    $region25: #{tpu_custom_call.1} parent=1 // pred_fallthru
      _
    // Predicated region
    $region26: #{tpu_custom_call.1} parent=1 // pred_check
      _
    $region27: #{tpu_custom_call.1} parent=1 // pred_check_branch
      %70 = sbr.rel (0) target = $region29
    $region28: #{tpu_custom_call.1} parent=1 // pred_region
      %72 = dma.done [#allocation4], 512
    $region29: #{tpu_custom_call.1} parent=1 // pred_fallthru
      _
    // Predicated region
    $region30: #{tpu_custom_call.1} parent=1 // pred_check
      _
    $region31: #{tpu_custom_call.1} parent=1 // pred_check_branch
      %74 = sbr.rel (0) target = $region33
    $region32: #{tpu_custom_call.1} parent=1 // pred_region
      %76 = dma.done [#allocation7], 64
    $region33: #{tpu_custom_call.1} parent=1 // pred_fallthru
      _
    // Predicated region
    $region34: #{tpu_custom_call.1} parent=1 // pred_check
      _
    $region35: #{tpu_custom_call.1} parent=1 // pred_check_branch
      %78 = sbr.rel (0) target = $region37
    $region36: #{tpu_custom_call.1} parent=1 // pred_region
      %80 = dma.done [#allocation7], 8192
    $region37: #{tpu_custom_call.1} parent=1 // pred_fallthru
      _
    // Predicated region
    $region38: #{tpu_custom_call.1} parent=1 // pred_check
      _
    $region39: #{tpu_custom_call.1} parent=1 // pred_check_branch
      %82 = sbr.rel (0) target = $region41
    $region40: #{tpu_custom_call.1} parent=1 // pred_region
      %84 = dma.done [#allocation10], 8192
    $region41: #{tpu_custom_call.1} parent=1 // pred_fallthru
      _
    %p85 = scmp.eq.s32.totalorder 0, 0
    // Predicated region
    $region42: #{tpu_custom_call.1} parent=1 // pred_check
      %p86 = pneg %p85
    $region43: #{tpu_custom_call.1} parent=1 // pred_check_branch
      %88 = sbr.rel (%p86) target = $region45
    $region44: #{tpu_custom_call.1} parent=1 // pred_region
      %v89 = vld [vmem:[#allocation3] sm:$0xff]
      %v90 = vld [vmem:[#allocation3 + $0x8] sm:$0xff]
      %v91 = vld [vmem:[#allocation3 + $0x10] sm:$0xff]
      %v92 = vld [vmem:[#allocation3 + $0x18] sm:$0xff]
      %v93 = vadd.f32 %v89, %v90
      %94 = vadd.xlane.f32.xlu0 %v93
      %v95 = vpop.xlane.xlu0 %94
      %v96 = vadd.f32 %v91, %v92
      %97 = vadd.xlane.f32.xlu0 %v96
      %v98 = vpop.xlane.xlu0 %97
      %v99 = vmul.f32 %v95, 0.00390625
      %v100 = vmul.f32 %v98, 0.00390625
      %v101 = vmul.f32 %v89, %v89
      %v102 = vmul.f32 %v90, %v90
      %v103 = vmul.f32 %v91, %v91
      %v104 = vmul.f32 %v92, %v92
      %v105 = vadd.f32 %v101, %v102
      %106 = vadd.xlane.f32.xlu0 %v105
      %v107 = vpop.xlane.xlu0 %106
      %v108 = vadd.f32 %v103, %v104
      %109 = vadd.xlane.f32.xlu0 %v108
      %v110 = vpop.xlane.xlu0 %109
      %v111 = vmul.f32 %v107, 0.00390625
      %v112 = vmul.f32 %v110, 0.00390625
      %v113 = vmul.f32 %v99, %v99
      %v114 = vmul.f32 %v100, %v100
      %v115 = vsub.f32 %v111, %v113
      %v116 = vsub.f32 %v112, %v114
      %v117 = vmax.f32 %v115, 0.0
      %v118 = vmax.f32 %v116, 0.0
      %v119 = vsub.f32 %v89, %v99
      %v120 = vsub.f32 %v90, %v99
      %v121 = vsub.f32 %v91, %v100
      %v122 = vsub.f32 %v92, %v100
      %v123 = vadd.f32 %v117, 1e-05
      %v124 = vadd.f32 %v118, 1e-05
      %v125 = vrsqrt.pop %v123
      %v126 = vmul.f32 %v125, %v123
      %v127 = vmul.f32 %v126, %v125
      %v128 = vmul.f32 0.5, %v127
      %v129 = vsub.f32 1.5, %v128
      %v130 = vmul.f32 %v125, %v129
      %vm131 = vweird.f32 %v123
      %vm132 = vweird.f32 %v125
      %vm133 = vmor %vm131, %vm132
      %v134 = vsel %vm133, %v125, %v130
      %v135 = vrsqrt.pop %v124
      %v136 = vmul.f32 %v135, %v124
      %v137 = vmul.f32 %v136, %v135
      %v138 = vmul.f32 0.5, %v137
      %v139 = vsub.f32 1.5, %v138
      %v140 = vmul.f32 %v135, %v139
      %vm141 = vweird.f32 %v124
      %vm142 = vweird.f32 %v135
      %vm143 = vmor %vm141, %vm142
      %v144 = vsel %vm143, %v135, %v140
      %v145 = vmul.f32 %v119, %v134
      %v146 = vmul.f32 %v120, %v134
      %v147 = vmul.f32 %v121, %v144
      %v148 = vmul.f32 %v122, %v144
      %v149 = vld [vmem:[#allocation6] ss:$2 sm:$0x3]
      %s150 = scalar_lea.vmem [#allocation6], 1
      %v151 = vld [vmem:[%s150] ss:$2 sm:$0x3]
      %v153 = vperm.slane %v149, 0
      %v154 = vperm.slane %v149, 1
      %v157 = vmul.f32 %v145, %v153
      %v158 = vmul.f32 %v146, %v154
      %v159 = vmul.f32 %v147, %v153
      %v160 = vmul.f32 %v148, %v154
      %v162 = vperm.slane %v151, 0
      %v163 = vperm.slane %v151, 1
      %v166 = vadd.f32 %v157, %v162
      %v167 = vadd.f32 %v158, %v163
      %v168 = vadd.f32 %v159, %v162
      %v169 = vadd.f32 %v160, %v163
      %170 = vst [vmem:[#allocation2] sm:$0xff] %v166
      %171 = vst [vmem:[#allocation2 + $0x8] sm:$0xff] %v167
      %172 = vst [vmem:[#allocation2 + $0x10] sm:$0xff] %v168
      %173 = vst [vmem:[#allocation2 + $0x18] sm:$0xff] %v169
    $region45: #{tpu_custom_call.1} parent=1 // pred_fallthru
      _
    %v174 = vld [vmem:[#allocation2] sm:$0xff]
    %v175 = vld [vmem:[#allocation2 + $0x8] sm:$0xff]
    %v176 = vld [vmem:[#allocation2 + $0x10] sm:$0xff]
    %v177 = vld [vmem:[#allocation2 + $0x18] sm:$0xff]
    %v178 = vld [vmem:[#allocation8] sm:$0xff]
    %v179 = vld [vmem:[#allocation8 + $0x8] sm:$0xff]
    %v180 = vld [vmem:[#allocation8 + $0x10] sm:$0xff]
    %v181 = vld [vmem:[#allocation8 + $0x18] sm:$0xff]
    %v182 = vld [vmem:[#allocation8 + $0x20] sm:$0xff]
    %v183 = vld [vmem:[#allocation8 + $0x28] sm:$0xff]
    %v184 = vld [vmem:[#allocation8 + $0x30] sm:$0xff]
    %v185 = vld [vmem:[#allocation8 + $0x38] sm:$0xff]
    %v186 = vld [vmem:[#allocation8 + $0x40] sm:$0xff]
    %v187 = vld [vmem:[#allocation8 + $0x48] sm:$0xff]
    %v188 = vld [vmem:[#allocation8 + $0x50] sm:$0xff]
    %v189 = vld [vmem:[#allocation8 + $0x58] sm:$0xff]
    %v190 = vld [vmem:[#allocation8 + $0x60] sm:$0xff]
    %v191 = vld [vmem:[#allocation8 + $0x68] sm:$0xff]
    %v192 = vld [vmem:[#allocation8 + $0x70] sm:$0xff]
    %v193 = vld [vmem:[#allocation8 + $0x78] sm:$0xff]
    %v194 = vld [vmem:[#allocation8 + $0x80] sm:$0xff]
    %v195 = vld [vmem:[#allocation8 + $0x88] sm:$0xff]
    %v196 = vld [vmem:[#allocation8 + $0x90] sm:$0xff]
    %v197 = vld [vmem:[#allocation8 + $0x98] sm:$0xff]
    %v198 = vld [vmem:[#allocation8 + $0xa0] sm:$0xff]
    %v199 = vld [vmem:[#allocation8 + $0xa8] sm:$0xff]
    %v200 = vld [vmem:[#allocation8 + $0xb0] sm:$0xff]
    %v201 = vld [vmem:[#allocation8 + $0xb8] sm:$0xff]
    %v202 = vld [vmem:[#allocation8 + $0xc0] sm:$0xff]
    %v203 = vld [vmem:[#allocation8 + $0xc8] sm:$0xff]
    %v204 = vld [vmem:[#allocation8 + $0xd0] sm:$0xff]
    %v205 = vld [vmem:[#allocation8 + $0xd8] sm:$0xff]
    %v206 = vld [vmem:[#allocation8 + $0xe0] sm:$0xff]
    %v207 = vld [vmem:[#allocation8 + $0xe8] sm:$0xff]
    %v208 = vld [vmem:[#allocation8 + $0xf0] sm:$0xff]
    %v209 = vld [vmem:[#allocation8 + $0xf8] sm:$0xff]
    %v210 = vld [vmem:[#allocation8 + $0x100] sm:$0xff]
    %v211 = vld [vmem:[#allocation8 + $0x108] sm:$0xff]
    %v212 = vld [vmem:[#allocation8 + $0x110] sm:$0xff]
    %v213 = vld [vmem:[#allocation8 + $0x118] sm:$0xff]
    %v214 = vld [vmem:[#allocation8 + $0x120] sm:$0xff]
    %v215 = vld [vmem:[#allocation8 + $0x128] sm:$0xff]
    %v216 = vld [vmem:[#allocation8 + $0x130] sm:$0xff]
    %v217 = vld [vmem:[#allocation8 + $0x138] sm:$0xff]
    %v218 = vld [vmem:[#allocation8 + $0x140] sm:$0xff]
    %v219 = vld [vmem:[#allocation8 + $0x148] sm:$0xff]
    %v220 = vld [vmem:[#allocation8 + $0x150] sm:$0xff]
    %v221 = vld [vmem:[#allocation8 + $0x158] sm:$0xff]
    %v222 = vld [vmem:[#allocation8 + $0x160] sm:$0xff]
    %v223 = vld [vmem:[#allocation8 + $0x168] sm:$0xff]
    %v224 = vld [vmem:[#allocation8 + $0x170] sm:$0xff]
    %v225 = vld [vmem:[#allocation8 + $0x178] sm:$0xff]
    %v226 = vld [vmem:[#allocation8 + $0x180] sm:$0xff]
    %v227 = vld [vmem:[#allocation8 + $0x188] sm:$0xff]
    %v228 = vld [vmem:[#allocation8 + $0x190] sm:$0xff]
    %v229 = vld [vmem:[#allocation8 + $0x198] sm:$0xff]
    %v230 = vld [vmem:[#allocation8 + $0x1a0] sm:$0xff]
    %v231 = vld [vmem:[#allocation8 + $0x1a8] sm:$0xff]
    %v232 = vld [vmem:[#allocation8 + $0x1b0] sm:$0xff]
    %v233 = vld [vmem:[#allocation8 + $0x1b8] sm:$0xff]
    %v234 = vld [vmem:[#allocation8 + $0x1c0] sm:$0xff]
    %v235 = vld [vmem:[#allocation8 + $0x1c8] sm:$0xff]
    %v236 = vld [vmem:[#allocation8 + $0x1d0] sm:$0xff]
    %v237 = vld [vmem:[#allocation8 + $0x1d8] sm:$0xff]
    %v238 = vld [vmem:[#allocation8 + $0x1e0] sm:$0xff]
    %v239 = vld [vmem:[#allocation8 + $0x1e8] sm:$0xff]
    %v240 = vld [vmem:[#allocation8 + $0x1f0] sm:$0xff]
    %v241 = vld [vmem:[#allocation8 + $0x1f8] sm:$0xff]
    %v242 = vld [vmem:[%s4] sm:$0x3]
    %v244 = vperm.slane %v242, 0
    %v245 = vperm.slane %v242, 1
    %248 = vmatpush.msra.mxu0 %v208
    %249 = vmatpush.msra.mxu0 %v206
    %250 = vmatpush.msra.mxu0 %v204
    %251 = vmatpush.msra.mxu0 %v202
    %252 = vmatpush.msra.mxu0 %v200
    %253 = vmatpush.msra.mxu0 %v198
    %254 = vmatpush.msra.mxu0 %v196
    %255 = vmatpush.msra.mxu0 %v194
    %256 = vmatpush.msra.mxu0 %v192
    %257 = vmatpush.msra.mxu0 %v190
    %258 = vmatpush.msra.mxu0 %v188
    %259 = vmatpush.msra.mxu0 %v186
    %260 = vmatpush.msra.mxu0 %v184
    %261 = vmatpush.msra.mxu0 %v182
    %262 = vmatpush.msra.mxu0 %v180
    %263 = vmatpush.msra.mxu0 %v178
    %264 = vmatmul.f32.gmra.mxu0 %v174
    %v265 = vpop.f32.mrf.mxu0
    %v266 = vadd.f32 %v244, %v265
    %267 = vmatmul.f32.gmra.mxu0 %v176
    %v268 = vpop.f32.mrf.mxu0
    %v269 = vadd.f32 %v244, %v268
    %270 = vdwg.mxu0
    %271 = vmatpush.msra.mxu0 %v240
    %272 = vmatpush.msra.mxu0 %v238
    %273 = vmatpush.msra.mxu0 %v236
    %274 = vmatpush.msra.mxu0 %v234
    %275 = vmatpush.msra.mxu0 %v232
    %276 = vmatpush.msra.mxu0 %v230
    %277 = vmatpush.msra.mxu0 %v228
    %278 = vmatpush.msra.mxu0 %v226
    %279 = vmatpush.msra.mxu0 %v224
    %280 = vmatpush.msra.mxu0 %v222
    %281 = vmatpush.msra.mxu0 %v220
    %282 = vmatpush.msra.mxu0 %v218
    %283 = vmatpush.msra.mxu0 %v216
    %284 = vmatpush.msra.mxu0 %v214
    %285 = vmatpush.msra.mxu0 %v212
    %286 = vmatpush.msra.mxu0 %v210
    %287 = vmatmul.f32.gmra.mxu0 %v175
    %v288 = vpop.f32.mrf.mxu0
    %v289 = vadd.f32 %v266, %v288
    %290 = vmatmul.f32.gmra.mxu0 %v177
    %v291 = vpop.f32.mrf.mxu0
    %v292 = vadd.f32 %v269, %v291
    %293 = vdwg.mxu0
    %294 = vmatpush.msra.mxu0 %v209
    %295 = vmatpush.msra.mxu0 %v207
    %296 = vmatpush.msra.mxu0 %v205
    %297 = vmatpush.msra.mxu0 %v203
    %298 = vmatpush.msra.mxu0 %v201
    %299 = vmatpush.msra.mxu0 %v199
    %300 = vmatpush.msra.mxu0 %v197
    %301 = vmatpush.msra.mxu0 %v195
    %302 = vmatpush.msra.mxu0 %v193
    %303 = vmatpush.msra.mxu0 %v191
    %304 = vmatpush.msra.mxu0 %v189
    %305 = vmatpush.msra.mxu0 %v187
    %306 = vmatpush.msra.mxu0 %v185
    %307 = vmatpush.msra.mxu0 %v183
    %308 = vmatpush.msra.mxu0 %v181
    %309 = vmatpush.msra.mxu0 %v179
    %310 = vmatmul.f32.gmra.mxu0 %v174
    %v311 = vpop.f32.mrf.mxu0
    %v312 = vadd.f32 %v245, %v311
    %313 = vmatmul.f32.gmra.mxu0 %v176
    %v314 = vpop.f32.mrf.mxu0
    %v315 = vadd.f32 %v245, %v314
    %316 = vdwg.mxu0
    %317 = vmatpush.msra.mxu0 %v241
    %318 = vmatpush.msra.mxu0 %v239
    %319 = vmatpush.msra.mxu0 %v237
    %320 = vmatpush.msra.mxu0 %v235
    %321 = vmatpush.msra.mxu0 %v233
    %322 = vmatpush.msra.mxu0 %v231
    %323 = vmatpush.msra.mxu0 %v229
    %324 = vmatpush.msra.mxu0 %v227
    %325 = vmatpush.msra.mxu0 %v225
    %326 = vmatpush.msra.mxu0 %v223
    %327 = vmatpush.msra.mxu0 %v221
    %328 = vmatpush.msra.mxu0 %v219
    %329 = vmatpush.msra.mxu0 %v217
    %330 = vmatpush.msra.mxu0 %v215
    %331 = vmatpush.msra.mxu0 %v213
    %332 = vmatpush.msra.mxu0 %v211
    %333 = vmatmul.f32.gmra.mxu0 %v175
    %v334 = vpop.f32.mrf.mxu0
    %v335 = vadd.f32 %v312, %v334
    %336 = vmatmul.f32.gmra.mxu0 %v177
    %v337 = vpop.f32.mrf.mxu0
    %v338 = vadd.f32 %v315, %v337
    %339 = vdwg.mxu0
    %v340 = vld [vmem:[#allocation9] sm:$0xff]
    %v341 = vld [vmem:[#allocation9 + $0x8] sm:$0xff]
    %v342 = vld [vmem:[#allocation9 + $0x10] sm:$0xff]
    %v343 = vld [vmem:[#allocation9 + $0x18] sm:$0xff]
    %v344 = vld [vmem:[#allocation9 + $0x20] sm:$0xff]
    %v345 = vld [vmem:[#allocation9 + $0x28] sm:$0xff]
    %v346 = vld [vmem:[#allocation9 + $0x30] sm:$0xff]
    %v347 = vld [vmem:[#allocation9 + $0x38] sm:$0xff]
    %v348 = vld [vmem:[#allocation9 + $0x40] sm:$0xff]
    %v349 = vld [vmem:[#allocation9 + $0x48] sm:$0xff]
    %v350 = vld [vmem:[#allocation9 + $0x50] sm:$0xff]
    %v351 = vld [vmem:[#allocation9 + $0x58] sm:$0xff]
    %v352 = vld [vmem:[#allocation9 + $0x60] sm:$0xff]
    %v353 = vld [vmem:[#allocation9 + $0x68] sm:$0xff]
    %v354 = vld [vmem:[#allocation9 + $0x70] sm:$0xff]
    %v355 = vld [vmem:[#allocation9 + $0x78] sm:$0xff]
    %v356 = vld [vmem:[#allocation9 + $0x80] sm:$0xff]
    %v357 = vld [vmem:[#allocation9 + $0x88] sm:$0xff]
    %v358 = vld [vmem:[#allocation9 + $0x90] sm:$0xff]
    %v359 = vld [vmem:[#allocation9 + $0x98] sm:$0xff]
    %v360 = vld [vmem:[#allocation9 + $0xa0] sm:$0xff]
    %v361 = vld [vmem:[#allocation9 + $0xa8] sm:$0xff]
    %v362 = vld [vmem:[#allocation9 + $0xb0] sm:$0xff]
    %v363 = vld [vmem:[#allocation9 + $0xb8] sm:$0xff]
    %v364 = vld [vmem:[#allocation9 + $0xc0] sm:$0xff]
    %v365 = vld [vmem:[#allocation9 + $0xc8] sm:$0xff]
    %v366 = vld [vmem:[#allocation9 + $0xd0] sm:$0xff]
    %v367 = vld [vmem:[#allocation9 + $0xd8] sm:$0xff]
    %v368 = vld [vmem:[#allocation9 + $0xe0] sm:$0xff]
    %v369 = vld [vmem:[#allocation9 + $0xe8] sm:$0xff]
    %v370 = vld [vmem:[#allocation9 + $0xf0] sm:$0xff]
    %v371 = vld [vmem:[#allocation9 + $0xf8] sm:$0xff]
    %v372 = vld [vmem:[#allocation9 + $0x100] sm:$0xff]
    %v373 = vld [vmem:[#allocation9 + $0x108] sm:$0xff]
    %v374 = vld [vmem:[#allocation9 + $0x110] sm:$0xff]
    %v375 = vld [vmem:[#allocation9 + $0x118] sm:$0xff]
    %v376 = vld [vmem:[#allocation9 + $0x120] sm:$0xff]
    %v377 = vld [vmem:[#allocation9 + $0x128] sm:$0xff]
    %v378 = vld [vmem:[#allocation9 + $0x130] sm:$0xff]
    %v379 = vld [vmem:[#allocation9 + $0x138] sm:$0xff]
    %v380 = vld [vmem:[#allocation9 + $0x140] sm:$0xff]
    %v381 = vld [vmem:[#allocation9 + $0x148] sm:$0xff]
    %v382 = vld [vmem:[#allocation9 + $0x150] sm:$0xff]
    %v383 = vld [vmem:[#allocation9 + $0x158] sm:$0xff]
    %v384 = vld [vmem:[#allocation9 + $0x160] sm:$0xff]
    %v385 = vld [vmem:[#allocation9 + $0x168] sm:$0xff]
    %v386 = vld [vmem:[#allocation9 + $0x170] sm:$0xff]
    %v387 = vld [vmem:[#allocation9 + $0x178] sm:$0xff]
    %v388 = vld [vmem:[#allocation9 + $0x180] sm:$0xff]
    %v389 = vld [vmem:[#allocation9 + $0x188] sm:$0xff]
    %v390 = vld [vmem:[#allocation9 + $0x190] sm:$0xff]
    %v391 = vld [vmem:[#allocation9 + $0x198] sm:$0xff]
    %v392 = vld [vmem:[#allocation9 + $0x1a0] sm:$0xff]
    %v393 = vld [vmem:[#allocation9 + $0x1a8] sm:$0xff]
    %v394 = vld [vmem:[#allocation9 + $0x1b0] sm:$0xff]
    %v395 = vld [vmem:[#allocation9 + $0x1b8] sm:$0xff]
    %v396 = vld [vmem:[#allocation9 + $0x1c0] sm:$0xff]
    %v397 = vld [vmem:[#allocation9 + $0x1c8] sm:$0xff]
    %v398 = vld [vmem:[#allocation9 + $0x1d0] sm:$0xff]
    %v399 = vld [vmem:[#allocation9 + $0x1d8] sm:$0xff]
    %v400 = vld [vmem:[#allocation9 + $0x1e0] sm:$0xff]
    %v401 = vld [vmem:[#allocation9 + $0x1e8] sm:$0xff]
    %v402 = vld [vmem:[#allocation9 + $0x1f0] sm:$0xff]
    %v403 = vld [vmem:[#allocation9 + $0x1f8] sm:$0xff]
    %v404 = vld [vmem:[%s5] sm:$0x3]
    %v406 = vperm.slane %v404, 0
    %v407 = vperm.slane %v404, 1
    %410 = vmatpush.msra.mxu0 %v370
    %411 = vmatpush.msra.mxu0 %v368
    %412 = vmatpush.msra.mxu0 %v366
    %413 = vmatpush.msra.mxu0 %v364
    %414 = vmatpush.msra.mxu0 %v362
    %415 = vmatpush.msra.mxu0 %v360
    %416 = vmatpush.msra.mxu0 %v358
    %417 = vmatpush.msra.mxu0 %v356
    %418 = vmatpush.msra.mxu0 %v354
    %419 = vmatpush.msra.mxu0 %v352
    %420 = vmatpush.msra.mxu0 %v350
    %421 = vmatpush.msra.mxu0 %v348
    %422 = vmatpush.msra.mxu0 %v346
    %423 = vmatpush.msra.mxu0 %v344
    %424 = vmatpush.msra.mxu0 %v342
    %425 = vmatpush.msra.mxu0 %v340
    %426 = vmatmul.f32.gmra.mxu0 %v174
    %v427 = vpop.f32.mrf.mxu0
    %v428 = vadd.f32 %v406, %v427
    %429 = vmatmul.f32.gmra.mxu0 %v176
    %v430 = vpop.f32.mrf.mxu0
    %v431 = vadd.f32 %v406, %v430
    %432 = vdwg.mxu0
    %433 = vmatpush.msra.mxu0 %v402
    %434 = vmatpush.msra.mxu0 %v400
    %435 = vmatpush.msra.mxu0 %v398
    %436 = vmatpush.msra.mxu0 %v396
    %437 = vmatpush.msra.mxu0 %v394
    %438 = vmatpush.msra.mxu0 %v392
    %439 = vmatpush.msra.mxu0 %v390
    %440 = vmatpush.msra.mxu0 %v388
    %441 = vmatpush.msra.mxu0 %v386
    %442 = vmatpush.msra.mxu0 %v384
    %443 = vmatpush.msra.mxu0 %v382
    %444 = vmatpush.msra.mxu0 %v380
    %445 = vmatpush.msra.mxu0 %v378
    %446 = vmatpush.msra.mxu0 %v376
    %447 = vmatpush.msra.mxu0 %v374
    %448 = vmatpush.msra.mxu0 %v372
    %449 = vmatmul.f32.gmra.mxu0 %v175
    %v450 = vpop.f32.mrf.mxu0
    %v451 = vadd.f32 %v428, %v450
    %452 = vmatmul.f32.gmra.mxu0 %v177
    %v453 = vpop.f32.mrf.mxu0
    %v454 = vadd.f32 %v431, %v453
    %455 = vdwg.mxu0
    %456 = vmatpush.msra.mxu0 %v371
    %457 = vmatpush.msra.mxu0 %v369
    %458 = vmatpush.msra.mxu0 %v367
    %459 = vmatpush.msra.mxu0 %v365
    %460 = vmatpush.msra.mxu0 %v363
    %461 = vmatpush.msra.mxu0 %v361
    %462 = vmatpush.msra.mxu0 %v359
    %463 = vmatpush.msra.mxu0 %v357
    %464 = vmatpush.msra.mxu0 %v355
    %465 = vmatpush.msra.mxu0 %v353
    %466 = vmatpush.msra.mxu0 %v351
    %467 = vmatpush.msra.mxu0 %v349
    %468 = vmatpush.msra.mxu0 %v347
    %469 = vmatpush.msra.mxu0 %v345
    %470 = vmatpush.msra.mxu0 %v343
    %471 = vmatpush.msra.mxu0 %v341
    %472 = vmatmul.f32.gmra.mxu0 %v174
    %v473 = vpop.f32.mrf.mxu0
    %v474 = vadd.f32 %v407, %v473
    %475 = vmatmul.f32.gmra.mxu0 %v176
    %v476 = vpop.f32.mrf.mxu0
    %v477 = vadd.f32 %v407, %v476
    %478 = vdwg.mxu0
    %479 = vmatpush.msra.mxu0 %v403
    %480 = vmatpush.msra.mxu0 %v401
    %481 = vmatpush.msra.mxu0 %v399
    %482 = vmatpush.msra.mxu0 %v397
    %483 = vmatpush.msra.mxu0 %v395
    %484 = vmatpush.msra.mxu0 %v393
    %485 = vmatpush.msra.mxu0 %v391
    %486 = vmatpush.msra.mxu0 %v389
    %487 = vmatpush.msra.mxu0 %v387
    %488 = vmatpush.msra.mxu0 %v385
    %489 = vmatpush.msra.mxu0 %v383
    %490 = vmatpush.msra.mxu0 %v381
    %491 = vmatpush.msra.mxu0 %v379
    %492 = vmatpush.msra.mxu0 %v377
    %493 = vmatpush.msra.mxu0 %v375
    %494 = vmatpush.msra.mxu0 %v373
    %495 = vmatmul.f32.gmra.mxu0 %v175
    %v496 = vpop.f32.mrf.mxu0
    %v497 = vadd.f32 %v474, %v496
    %498 = vmatmul.f32.gmra.mxu0 %v177
    %v499 = vpop.f32.mrf.mxu0
    %v500 = vadd.f32 %v477, %v499
    %501 = vdwg.mxu0
    %v502 = vmul.f32 %v451, 0.5
    %v503 = vmul.f32 %v497, 0.5
    %v504 = vmul.f32 %v454, 0.5
    %v505 = vmul.f32 %v500, 0.5
    %v506 = vmul.f32 %v451, 0.70710677
    %v507 = vmul.f32 %v497, 0.70710677
    %v508 = vmul.f32 %v454, 0.70710677
    %v509 = vmul.f32 %v500, 0.70710677
    %v510 = vmul.f32 %v506, %v506
    %v511 = vmin.f32 16.0, %v510
    %v512 = vmul.f32 %v511, 2.1237322e-06
    %v513 = vadd.f32 %v512, 0.00028619796
    %v514 = vmul.f32 %v511, %v513
    %v515 = vadd.f32 %v514, 0.0036580483
    %v516 = vmul.f32 %v511, %v515
    %v517 = vadd.f32 %v516, 0.05243302
    %v518 = vmul.f32 %v511, %v517
    %v519 = vadd.f32 %v518, 0.18741608
    %v520 = vmul.f32 %v511, %v519
    %v521 = vadd.f32 %v520, 1.1283791
    %v522 = vmul.f32 %v506, %v521
    %v523 = vmul.f32 %v511, 3.8918573e-05
    %v524 = vadd.f32 %v523, 0.001143296
    %v525 = vmul.f32 %v511, %v524
    %v526 = vadd.f32 %v525, 0.014752088
    %v527 = vmul.f32 %v511, %v526
    %v528 = vadd.f32 %v527, 0.112945676
    %v529 = vmul.f32 %v511, %v528
    %v530 = vadd.f32 %v529, 0.4994258
    %v531 = vmul.f32 %v511, %v530
    %v532 = vadd.f32 %v531, 1.0
    %v533 = vrcp.pop %v532
    %v534 = vmul.f32 %v532, %v533
    %v535 = vsub.f32 1.0, %v534
    %v536 = vmul.f32 %v533, %v535
    %v537 = vadd.f32 %v533, %v536
    %vm538 = vweird.f32 %v532
    %vm539 = vweird.f32 %v533
    %vm540 = vmor %vm538, %vm539
    %v541 = vsel %vm540, %v533, %v537
    %v542 = vand.u32 2147483647, %v532
    %vm543 = vcmp.eq.f32.partialorder %v542, 8.507059e+37
    %v544 = vand.u32 %v532, 2147483648
    %v545 = vor.u32 1.1754944e-38, %v544
    %v546 = vsel %vm543, %v545, %v541
    %v547 = vmul.f32 %v522, %v546
    %v548 = vmin.f32 %v547, 1.0
    %v549 = vmax.f32 %v548, -1.0
    %v550 = vmul.f32 %v507, %v507
    %v551 = vmin.f32 16.0, %v550
    %v552 = vmul.f32 %v551, 2.1237322e-06
    %v553 = vadd.f32 %v552, 0.00028619796
    %v554 = vmul.f32 %v551, %v553
    %v555 = vadd.f32 %v554, 0.0036580483
    %v556 = vmul.f32 %v551, %v555
    %v557 = vadd.f32 %v556, 0.05243302
    %v558 = vmul.f32 %v551, %v557
    %v559 = vadd.f32 %v558, 0.18741608
    %v560 = vmul.f32 %v551, %v559
    %v561 = vadd.f32 %v560, 1.1283791
    %v562 = vmul.f32 %v507, %v561
    %v563 = vmul.f32 %v551, 3.8918573e-05
    %v564 = vadd.f32 %v563, 0.001143296
    %v565 = vmul.f32 %v551, %v564
    %v566 = vadd.f32 %v565, 0.014752088
    %v567 = vmul.f32 %v551, %v566
    %v568 = vadd.f32 %v567, 0.112945676
    %v569 = vmul.f32 %v551, %v568
    %v570 = vadd.f32 %v569, 0.4994258
    %v571 = vmul.f32 %v551, %v570
    %v572 = vadd.f32 %v571, 1.0
    %v573 = vrcp.pop %v572
    %v574 = vmul.f32 %v572, %v573
    %v575 = vsub.f32 1.0, %v574
    %v576 = vmul.f32 %v573, %v575
    %v577 = vadd.f32 %v573, %v576
    %vm578 = vweird.f32 %v572
    %vm579 = vweird.f32 %v573
    %vm580 = vmor %vm578, %vm579
    %v581 = vsel %vm580, %v573, %v577
    %v582 = vand.u32 2147483647, %v572
    %vm583 = vcmp.eq.f32.partialorder %v582, 8.507059e+37
    %v584 = vand.u32 %v572, 2147483648
    %v585 = vor.u32 1.1754944e-38, %v584
    %v586 = vsel %vm583, %v585, %v581
    %v587 = vmul.f32 %v562, %v586
    %v588 = vmin.f32 %v587, 1.0
    %v589 = vmax.f32 %v588, -1.0
    %v590 = vmul.f32 %v508, %v508
    %v591 = vmin.f32 16.0, %v590
    %v592 = vmul.f32 %v591, 2.1237322e-06
    %v593 = vadd.f32 %v592, 0.00028619796
    %v594 = vmul.f32 %v591, %v593
    %v595 = vadd.f32 %v594, 0.0036580483
    %v596 = vmul.f32 %v591, %v595
    %v597 = vadd.f32 %v596, 0.05243302
    %v598 = vmul.f32 %v591, %v597
    %v599 = vadd.f32 %v598, 0.18741608
    %v600 = vmul.f32 %v591, %v599
    %v601 = vadd.f32 %v600, 1.1283791
    %v602 = vmul.f32 %v508, %v601
    %v603 = vmul.f32 %v591, 3.8918573e-05
    %v604 = vadd.f32 %v603, 0.001143296
    %v605 = vmul.f32 %v591, %v604
    %v606 = vadd.f32 %v605, 0.014752088
    %v607 = vmul.f32 %v591, %v606
    %v608 = vadd.f32 %v607, 0.112945676
    %v609 = vmul.f32 %v591, %v608
    %v610 = vadd.f32 %v609, 0.4994258
    %v611 = vmul.f32 %v591, %v610
    %v612 = vadd.f32 %v611, 1.0
    %v613 = vrcp.pop %v612
    %v614 = vmul.f32 %v612, %v613
    %v615 = vsub.f32 1.0, %v614
    %v616 = vmul.f32 %v613, %v615
    %v617 = vadd.f32 %v613, %v616
    %vm618 = vweird.f32 %v612
    %vm619 = vweird.f32 %v613
    %vm620 = vmor %vm618, %vm619
    %v621 = vsel %vm620, %v613, %v617
    %v622 = vand.u32 2147483647, %v612
    %vm623 = vcmp.eq.f32.partialorder %v622, 8.507059e+37
    %v624 = vand.u32 %v612, 2147483648
    %v625 = vor.u32 1.1754944e-38, %v624
    %v626 = vsel %vm623, %v625, %v621
    %v627 = vmul.f32 %v602, %v626
    %v628 = vmin.f32 %v627, 1.0
    %v629 = vmax.f32 %v628, -1.0
    %v630 = vmul.f32 %v509, %v509
    %v631 = vmin.f32 16.0, %v630
    %v632 = vmul.f32 %v631, 2.1237322e-06
    %v633 = vadd.f32 %v632, 0.00028619796
    %v634 = vmul.f32 %v631, %v633
    %v635 = vadd.f32 %v634, 0.0036580483
    %v636 = vmul.f32 %v631, %v635
    %v637 = vadd.f32 %v636, 0.05243302
    %v638 = vmul.f32 %v631, %v637
    %v639 = vadd.f32 %v638, 0.18741608
    %v640 = vmul.f32 %v631, %v639
    %v641 = vadd.f32 %v640, 1.1283791
    %v642 = vmul.f32 %v509, %v641
    %v643 = vmul.f32 %v631, 3.8918573e-05
    %v644 = vadd.f32 %v643, 0.001143296
    %v645 = vmul.f32 %v631, %v644
    %v646 = vadd.f32 %v645, 0.014752088
    %v647 = vmul.f32 %v631, %v646
    %v648 = vadd.f32 %v647, 0.112945676
    %v649 = vmul.f32 %v631, %v648
    %v650 = vadd.f32 %v649, 0.4994258
    %v651 = vmul.f32 %v631, %v650
    %v652 = vadd.f32 %v651, 1.0
    %v653 = vrcp.pop %v652
    %v654 = vmul.f32 %v652, %v653
    %v655 = vsub.f32 1.0, %v654
    %v656 = vmul.f32 %v653, %v655
    %v657 = vadd.f32 %v653, %v656
    %vm658 = vweird.f32 %v652
    %vm659 = vweird.f32 %v653
    %vm660 = vmor %vm658, %vm659
    %v661 = vsel %vm660, %v653, %v657
    %v662 = vand.u32 2147483647, %v652
    %vm663 = vcmp.eq.f32.partialorder %v662, 8.507059e+37
    %v664 = vand.u32 %v652, 2147483648
    %v665 = vor.u32 1.1754944e-38, %v664
    %v666 = vsel %vm663, %v665, %v661
    %v667 = vmul.f32 %v642, %v666
    %v668 = vmin.f32 %v667, 1.0
    %v669 = vmax.f32 %v668, -1.0
    %v670 = vadd.f32 %v549, 1.0
    %v671 = vadd.f32 %v589, 1.0
    %v672 = vadd.f32 %v629, 1.0
    %v673 = vadd.f32 %v669, 1.0
    %v674 = vmul.f32 %v502, %v670
    %v675 = vmul.f32 %v503, %v671
    %v676 = vmul.f32 %v504, %v672
    %v677 = vmul.f32 %v505, %v673
    %v678 = vmul.f32 %v289, %v674
    %v679 = vmul.f32 %v335, %v675
    %v680 = vmul.f32 %v292, %v676
    %v681 = vmul.f32 %v338, %v677
    %682 = vst [vmem:[#allocation11] sm:$0xff] %v678
    %683 = vst [vmem:[#allocation11 + $0x8] sm:$0xff] %v679
    %684 = vst [vmem:[#allocation11 + $0x10] sm:$0xff] %v680
    %685 = vst [vmem:[#allocation11 + $0x18] sm:$0xff] %v681
    // Predicated region
    $region46: #{tpu_custom_call.1} parent=1 // pred_check
      _
    $region47: #{tpu_custom_call.1} parent=1 // pred_check_branch
      %687 = sbr.rel (0) target = $region49
    $region48: #{tpu_custom_call.1} parent=1 // pred_region
      %689 = vsyncadd [#allocation5], 0
      %s690 = sshll.u32 [#allocation11], 4
      %s691 = int_to_ptr.vmem [resolvable:$true] %s690
      %s692 = sshll.u32 %s6, 4
      %s693 = int_to_ptr.hbm [resolvable:$true] %s692
      %698 = dma.vmem_to_hbm [thread:$0]  %s691, 512, %s693, [#allocation5], 256, 256, 16
    $region49: #{tpu_custom_call.1} parent=1 // pred_fallthru
      _
    // Predicated region
    $region50: #{tpu_custom_call.1} parent=1 // pred_check
      _
    $region51: #{tpu_custom_call.1} parent=1 // pred_check_branch
      %700 = sbr.rel (0) target = $region53
    $region52: #{tpu_custom_call.1} parent=1 // pred_region
      %702 = dma.done [#allocation5], 512
    $region53: #{tpu_custom_call.1} parent=1 // pred_fallthru
      _
    %703 = vsyncpa [#allocation4], 1
    %704 = vsyncpa [#allocation7], 1
    %705 = vsyncpa [#allocation10], 1
    %706 = vsyncpa [#allocation5], 1

// kernel: tpu_custom_call.1
$region0: #{tpu_custom_call.1}
  #allocation0 [shape = 'u32[]', space=smem, size = 0x4, offset = 0x4, fixed_abs, tag = 'smem constant byte address 0x4 - core index']
  #allocation1 [shape = 'u32[72,128]{1,0:T(1,128)}', space=vmem, size = 0x9000, scoped, tag = 'internal scratch']
  #allocation2 [shape = 'f32[16,256]{1,0:T(8,128)}', space=vmem, size = 0x4000, scoped, tag = 'scratch operand']
  %s0 = inlined_call_operand.hbm [shape: f32[16,256], index: 0, kind: input, shape index: {}]
  %s1 = inlined_call_operand.hbm [shape: f32[2,256], index: 1, kind: input, shape index: {}]
  %s2 = inlined_call_operand.hbm [shape: f32[256,256], index: 2, kind: input, shape index: {}]
  %s3 = inlined_call_operand.hbm [shape: f32[256,256], index: 3, kind: input, shape index: {}]
  %s4 = inlined_call_operand.vmem [shape: f32[1,256], index: 4, kind: input, shape index: {}]
  %s5 = inlined_call_operand.vmem [shape: f32[1,256], index: 5, kind: input, shape index: {}]
  %s6 = inlined_call_operand.hbm [shape: f32[16,256], index: 6, kind: output, shape index: {}]
  %s7 = sld [smem:[#allocation0]]
  $region54: #{tpu_custom_call.1} parent=0
    _
  %s9 = ssub.s32 1, %s7
  %s10 = scalar_select 0, %s9, %s7
  $region1: #{tpu_custom_call.1} parent=0
    #allocation3 [shape = 'u8[16384]{0}', space=vmem, size = 0x4000, scoped, tag = 'input window, operand 0, single buffered']
    #allocation4 [shape = 's32[1]{0}', space=sflag, size = 0x4, scoped, tag = 'scoped memory for tpu_custom_call.1']
    #allocation5 [shape = 's32[1]{0}', space=sflag, size = 0x4, scoped, tag = 'scoped memory for tpu_custom_call.1']
    #allocation6 [shape = 'u8[2048]{0}', space=vmem, size = 0x800, scoped, tag = 'input window, operand 1, single buffered']
    #allocation7 [shape = 's32[1]{0}', space=sflag, size = 0x4, scoped, tag = 'scoped memory for tpu_custom_call.1']
    #allocation8 [shape = 'u8[262144]{0}', space=vmem, size = 0x40000, scoped, tag = 'input window, operand 2, single buffered']
    #allocation9 [shape = 'u8[262144]{0}', space=vmem, size = 0x40000, scoped, tag = 'input window, operand 3, single buffered']
    #allocation10 [shape = 's32[1]{0}', space=sflag, size = 0x4, scoped, tag = 'scoped memory for tpu_custom_call.1']
    #allocation11 [shape = 'u8[16384]{0}', space=vmem, size = 0x4000, scoped, tag = 'output window, operand 0, single buffered']
    %11 = vsyncpa [#allocation4], 0
    %12 = vsyncpa [#allocation7], 0
    %13 = vsyncpa [#allocation10], 0
    %14 = vsyncpa [#allocation5], 0
    // Predicated region
    $region2: #{tpu_custom_call.1} parent=1 // pred_check
      _
    $region3: #{tpu_custom_call.1} parent=1 // pred_check_branch
      %16 = sbr.rel (0) target = $region5
    $region4: #{tpu_custom_call.1} parent=1 // pred_region
      %18 = vsyncadd [#allocation4], 0
      %s19 = sshll.u32 %s0, 4
      %s20 = int_to_ptr.hbm [resolvable:$true] %s19
      %s21 = sshll.u32 [#allocation3], 4
      %s22 = int_to_ptr.vmem [resolvable:$true] %s21
      %27 = dma.hbm_to_vmem [thread:$0]  %s20, 512, %s22, [#allocation4], 256, 256, 16
    $region5: #{tpu_custom_call.1} parent=1 // pred_fallthru
      _
    // Predicated region
    $region6: #{tpu_custom_call.1} parent=1 // pred_check
      _
    $region7: #{tpu_custom_call.1} parent=1 // pred_check_branch
      %29 = sbr.rel (0) target = $region9
    $region8: #{tpu_custom_call.1} parent=1 // pred_region
      %31 = vsyncadd [#allocation7], 0
      %s33 = sshll.u32 %s1, 4
      %s34 = int_to_ptr.hbm [resolvable:$true] %s33
      %s35 = sshll.u32 [#allocation6], 4
      %s36 = int_to_ptr.vmem [resolvable:$true] %s35
      %38 = dma.hbm_to_vmem [thread:$0]  %s34, 64, %s36, [#allocation7]
    $region9: #{tpu_custom_call.1} parent=1 // pred_fallthru
      _
    // Predicated region
    $region10: #{tpu_custom_call.1} parent=1 // pred_check
      _
    $region11: #{tpu_custom_call.1} parent=1 // pred_check_branch
      %40 = sbr.rel (0) target = $region13
    $region12: #{tpu_custom_call.1} parent=1 // pred_region
      %42 = vsyncadd [#allocation7], 0
      %s43 = sshll.u32 %s2, 4
      %s44 = int_to_ptr.hbm [resolvable:$true] %s43
      %s45 = sshll.u32 [#allocation8], 4
      %s46 = int_to_ptr.vmem [resolvable:$true] %s45
      %51 = dma.hbm_to_vmem [thread:$0]  %s44, 8192, %s46, [#allocation7], 256, 256, 16
    $region13: #{tpu_custom_call.1} parent=1 // pred_fallthru
      _
    // Predicated region
    $region14: #{tpu_custom_call.1} parent=1 // pred_check
      _
    $region15: #{tpu_custom_call.1} parent=1 // pred_check_branch
      %53 = sbr.rel (0) target = $region17
    $region16: #{tpu_custom_call.1} parent=1 // pred_region
      %55 = vsyncadd [#allocation10], 0
      %s56 = sshll.u32 %s3, 4
      %s57 = int_to_ptr.hbm [resolvable:$true] %s56
      %s58 = sshll.u32 [#allocation9], 4
      %s59 = int_to_ptr.vmem [resolvable:$true] %s58
      %64 = dma.hbm_to_vmem [thread:$0]  %s57, 8192, %s59, [#allocation10], 256, 256, 16
    $region17: #{tpu_custom_call.1} parent=1 // pred_fallthru
      _
    // Predicated region
    $region18: #{tpu_custom_call.1} parent=1 // pred_check
      _
    $region19: #{tpu_custom_call.1} parent=1 // pred_check_branch
      %66 = sbr.rel (0) target = $region21
    $region20: #{tpu_custom_call.1} parent=1 // pred_region
      _
    $region21: #{tpu_custom_call.1} parent=1 // pred_fallthru
      _
    // Predicated region
    $region22: #{tpu_custom_call.1} parent=1 // pred_check
      _
    $region23: #{tpu_custom_call.1} parent=1 // pred_check_branch
      %68 = sbr.rel (0) target = $region25
    $region24: #{tpu_custom_call.1} parent=1 // pred_region
      _
    $region25: #{tpu_custom_call.1} parent=1 // pred_fallthru
      _
    // Predicated region
    $region26: #{tpu_custom_call.1} parent=1 // pred_check
      _
    $region27: #{tpu_custom_call.1} parent=1 // pred_check_branch
      %70 = sbr.rel (0) target = $region29
    $region28: #{tpu_custom_call.1} parent=1 // pred_region
      %72 = dma.done [#allocation4], 512
    $region29: #{tpu_custom_call.1} parent=1 // pred_fallthru
      _
    // Predicated region
    $region30: #{tpu_custom_call.1} parent=1 // pred_check
      _
    $region31: #{tpu_custom_call.1} parent=1 // pred_check_branch
      %74 = sbr.rel (0) target = $region33
    $region32: #{tpu_custom_call.1} parent=1 // pred_region
      %76 = dma.done [#allocation7], 64
    $region33: #{tpu_custom_call.1} parent=1 // pred_fallthru
      _
    // Predicated region
    $region34: #{tpu_custom_call.1} parent=1 // pred_check
      _
    $region35: #{tpu_custom_call.1} parent=1 // pred_check_branch
      %78 = sbr.rel (0) target = $region37
    $region36: #{tpu_custom_call.1} parent=1 // pred_region
      %80 = dma.done [#allocation7], 8192
    $region37: #{tpu_custom_call.1} parent=1 // pred_fallthru
      _
    // Predicated region
    $region38: #{tpu_custom_call.1} parent=1 // pred_check
      _
    $region39: #{tpu_custom_call.1} parent=1 // pred_check_branch
      %82 = sbr.rel (0) target = $region41
    $region40: #{tpu_custom_call.1} parent=1 // pred_region
      %84 = dma.done [#allocation10], 8192
    $region41: #{tpu_custom_call.1} parent=1 // pred_fallthru
      _
    %p85 = scmp.eq.s32.totalorder 0, 0
    // Predicated region
    $region42: #{tpu_custom_call.1} parent=1 // pred_check
      %p86 = pneg %p85
    $region43: #{tpu_custom_call.1} parent=1 // pred_check_branch
      %88 = sbr.rel (%p86) target = $region45
    $region44: #{tpu_custom_call.1} parent=1 // pred_region
      %v89 = vld [vmem:[#allocation3] sm:$0xff]
      %v90 = vld [vmem:[#allocation3 + $0x8] sm:$0xff]
      %v91 = vld [vmem:[#allocation3 + $0x10] sm:$0xff]
      %v92 = vld [vmem:[#allocation3 + $0x18] sm:$0xff]
      %v93 = vadd.f32 %v89, %v90
      %94 = vadd.xlane.f32.xlu0 %v93
      %v95 = vpop.xlane.xlu0 %94
      %v96 = vadd.f32 %v91, %v92
      %97 = vadd.xlane.f32.xlu0 %v96
      %v98 = vpop.xlane.xlu0 %97
      %v99 = vmul.f32 %v95, 0.00390625
      %v100 = vmul.f32 %v98, 0.00390625
      %v101 = vmul.f32 %v89, %v89
      %v102 = vmul.f32 %v90, %v90
      %v103 = vmul.f32 %v91, %v91
      %v104 = vmul.f32 %v92, %v92
      %v105 = vadd.f32 %v101, %v102
      %106 = vadd.xlane.f32.xlu0 %v105
      %v107 = vpop.xlane.xlu0 %106
      %v108 = vadd.f32 %v103, %v104
      %109 = vadd.xlane.f32.xlu0 %v108
      %v110 = vpop.xlane.xlu0 %109
      %v111 = vmul.f32 %v107, 0.00390625
      %v112 = vmul.f32 %v110, 0.00390625
      %v113 = vmul.f32 %v99, %v99
      %v114 = vmul.f32 %v100, %v100
      %v115 = vsub.f32 %v111, %v113
      %v116 = vsub.f32 %v112, %v114
      %v117 = vmax.f32 %v115, 0.0
      %v118 = vmax.f32 %v116, 0.0
      %v119 = vsub.f32 %v89, %v99
      %v120 = vsub.f32 %v90, %v99
      %v121 = vsub.f32 %v91, %v100
      %v122 = vsub.f32 %v92, %v100
      %v123 = vadd.f32 %v117, 1e-05
      %v124 = vadd.f32 %v118, 1e-05
      %v125 = vrsqrt.pop %v123
      %v126 = vmul.f32 %v125, %v123
      %v127 = vmul.f32 %v126, %v125
      %v128 = vmul.f32 0.5, %v127
      %v129 = vsub.f32 1.5, %v128
      %v130 = vmul.f32 %v125, %v129
      %vm131 = vweird.f32 %v123
      %vm132 = vweird.f32 %v125
      %vm133 = vmor %vm131, %vm132
      %v134 = vsel %vm133, %v125, %v130
      %v135 = vrsqrt.pop %v124
      %v136 = vmul.f32 %v135, %v124
      %v137 = vmul.f32 %v136, %v135
      %v138 = vmul.f32 0.5, %v137
      %v139 = vsub.f32 1.5, %v138
      %v140 = vmul.f32 %v135, %v139
      %vm141 = vweird.f32 %v124
      %vm142 = vweird.f32 %v135
      %vm143 = vmor %vm141, %vm142
      %v144 = vsel %vm143, %v135, %v140
      %v145 = vmul.f32 %v119, %v134
      %v146 = vmul.f32 %v120, %v134
      %v147 = vmul.f32 %v121, %v144
      %v148 = vmul.f32 %v122, %v144
      %v149 = vld [vmem:[#allocation6] ss:$2 sm:$0x3]
      %s150 = scalar_lea.vmem [#allocation6], 1
      %v151 = vld [vmem:[%s150] ss:$2 sm:$0x3]
      %v153 = vperm.slane %v149, 0
      %v154 = vperm.slane %v149, 1
      %v157 = vmul.f32 %v145, %v153
      %v158 = vmul.f32 %v146, %v154
      %v159 = vmul.f32 %v147, %v153
      %v160 = vmul.f32 %v148, %v154
      %v162 = vperm.slane %v151, 0
      %v163 = vperm.slane %v151, 1
      %v166 = vadd.f32 %v157, %v162
      %v167 = vadd.f32 %v158, %v163
      %v168 = vadd.f32 %v159, %v162
      %v169 = vadd.f32 %v160, %v163
      %170 = vst [vmem:[#allocation2] sm:$0xff] %v166
      %171 = vst [vmem:[#allocation2 + $0x8] sm:$0xff] %v167
      %172 = vst [vmem:[#allocation2 + $0x10] sm:$0xff] %v168
      %173 = vst [vmem:[#allocation2 + $0x18] sm:$0xff] %v169
    $region45: #{tpu_custom_call.1} parent=1 // pred_fallthru
      _
    %v174 = vld [vmem:[#allocation2] sm:$0xff]
    %v175 = vld [vmem:[#allocation2 + $0x8] sm:$0xff]
    %v176 = vld [vmem:[#allocation2 + $0x10] sm:$0xff]
    %v177 = vld [vmem:[#allocation2 + $0x18] sm:$0xff]
    %v178 = vld [vmem:[#allocation8] sm:$0xff]
    %v179 = vld [vmem:[#allocation8 + $0x8] sm:$0xff]
    %v180 = vld [vmem:[#allocation8 + $0x10] sm:$0xff]
    %v181 = vld [vmem:[#allocation8 + $0x18] sm:$0xff]
    %v182 = vld [vmem:[#allocation8 + $0x20] sm:$0xff]
    %v183 = vld [vmem:[#allocation8 + $0x28] sm:$0xff]
    %v184 = vld [vmem:[#allocation8 + $0x30] sm:$0xff]
    %v185 = vld [vmem:[#allocation8 + $0x38] sm:$0xff]
    %v186 = vld [vmem:[#allocation8 + $0x40] sm:$0xff]
    %v187 = vld [vmem:[#allocation8 + $0x48] sm:$0xff]
    %v188 = vld [vmem:[#allocation8 + $0x50] sm:$0xff]
    %v189 = vld [vmem:[#allocation8 + $0x58] sm:$0xff]
    %v190 = vld [vmem:[#allocation8 + $0x60] sm:$0xff]
    %v191 = vld [vmem:[#allocation8 + $0x68] sm:$0xff]
    %v192 = vld [vmem:[#allocation8 + $0x70] sm:$0xff]
    %v193 = vld [vmem:[#allocation8 + $0x78] sm:$0xff]
    %v194 = vld [vmem:[#allocation8 + $0x80] sm:$0xff]
    %v195 = vld [vmem:[#allocation8 + $0x88] sm:$0xff]
    %v196 = vld [vmem:[#allocation8 + $0x90] sm:$0xff]
    %v197 = vld [vmem:[#allocation8 + $0x98] sm:$0xff]
    %v198 = vld [vmem:[#allocation8 + $0xa0] sm:$0xff]
    %v199 = vld [vmem:[#allocation8 + $0xa8] sm:$0xff]
    %v200 = vld [vmem:[#allocation8 + $0xb0] sm:$0xff]
    %v201 = vld [vmem:[#allocation8 + $0xb8] sm:$0xff]
    %v202 = vld [vmem:[#allocation8 + $0xc0] sm:$0xff]
    %v203 = vld [vmem:[#allocation8 + $0xc8] sm:$0xff]
    %v204 = vld [vmem:[#allocation8 + $0xd0] sm:$0xff]
    %v205 = vld [vmem:[#allocation8 + $0xd8] sm:$0xff]
    %v206 = vld [vmem:[#allocation8 + $0xe0] sm:$0xff]
    %v207 = vld [vmem:[#allocation8 + $0xe8] sm:$0xff]
    %v208 = vld [vmem:[#allocation8 + $0xf0] sm:$0xff]
    %v209 = vld [vmem:[#allocation8 + $0xf8] sm:$0xff]
    %v210 = vld [vmem:[#allocation8 + $0x100] sm:$0xff]
    %v211 = vld [vmem:[#allocation8 + $0x108] sm:$0xff]
    %v212 = vld [vmem:[#allocation8 + $0x110] sm:$0xff]
    %v213 = vld [vmem:[#allocation8 + $0x118] sm:$0xff]
    %v214 = vld [vmem:[#allocation8 + $0x120] sm:$0xff]
    %v215 = vld [vmem:[#allocation8 + $0x128] sm:$0xff]
    %v216 = vld [vmem:[#allocation8 + $0x130] sm:$0xff]
    %v217 = vld [vmem:[#allocation8 + $0x138] sm:$0xff]
    %v218 = vld [vmem:[#allocation8 + $0x140] sm:$0xff]
    %v219 = vld [vmem:[#allocation8 + $0x148] sm:$0xff]
    %v220 = vld [vmem:[#allocation8 + $0x150] sm:$0xff]
    %v221 = vld [vmem:[#allocation8 + $0x158] sm:$0xff]
    %v222 = vld [vmem:[#allocation8 + $0x160] sm:$0xff]
    %v223 = vld [vmem:[#allocation8 + $0x168] sm:$0xff]
    %v224 = vld [vmem:[#allocation8 + $0x170] sm:$0xff]
    %v225 = vld [vmem:[#allocation8 + $0x178] sm:$0xff]
    %v226 = vld [vmem:[#allocation8 + $0x180] sm:$0xff]
    %v227 = vld [vmem:[#allocation8 + $0x188] sm:$0xff]
    %v228 = vld [vmem:[#allocation8 + $0x190] sm:$0xff]
    %v229 = vld [vmem:[#allocation8 + $0x198] sm:$0xff]
    %v230 = vld [vmem:[#allocation8 + $0x1a0] sm:$0xff]
    %v231 = vld [vmem:[#allocation8 + $0x1a8] sm:$0xff]
    %v232 = vld [vmem:[#allocation8 + $0x1b0] sm:$0xff]
    %v233 = vld [vmem:[#allocation8 + $0x1b8] sm:$0xff]
    %v234 = vld [vmem:[#allocation8 + $0x1c0] sm:$0xff]
    %v235 = vld [vmem:[#allocation8 + $0x1c8] sm:$0xff]
    %v236 = vld [vmem:[#allocation8 + $0x1d0] sm:$0xff]
    %v237 = vld [vmem:[#allocation8 + $0x1d8] sm:$0xff]
    %v238 = vld [vmem:[#allocation8 + $0x1e0] sm:$0xff]
    %v239 = vld [vmem:[#allocation8 + $0x1e8] sm:$0xff]
    %v240 = vld [vmem:[#allocation8 + $0x1f0] sm:$0xff]
    %v241 = vld [vmem:[#allocation8 + $0x1f8] sm:$0xff]
    %v242 = vld [vmem:[%s4] sm:$0x3]
    %v244 = vperm.slane %v242, 0
    %v245 = vperm.slane %v242, 1
    %248 = vmatpush.msra.mxu0 %v208
    %249 = vmatpush.msra.mxu0 %v206
    %250 = vmatpush.msra.mxu0 %v204
    %251 = vmatpush.msra.mxu0 %v202
    %252 = vmatpush.msra.mxu0 %v200
    %253 = vmatpush.msra.mxu0 %v198
    %254 = vmatpush.msra.mxu0 %v196
    %255 = vmatpush.msra.mxu0 %v194
    %256 = vmatpush.msra.mxu0 %v192
    %257 = vmatpush.msra.mxu0 %v190
    %258 = vmatpush.msra.mxu0 %v188
    %259 = vmatpush.msra.mxu0 %v186
    %260 = vmatpush.msra.mxu0 %v184
    %261 = vmatpush.msra.mxu0 %v182
    %262 = vmatpush.msra.mxu0 %v180
    %263 = vmatpush.msra.mxu0 %v178
    %264 = vmatmul.f32.gmra.mxu0 %v174
    %v265 = vpop.f32.mrf.mxu0
    %v266 = vadd.f32 %v244, %v265
    %267 = vmatmul.f32.gmra.mxu0 %v176
    %v268 = vpop.f32.mrf.mxu0
    %v269 = vadd.f32 %v244, %v268
    %270 = vdwg.mxu0
    %271 = vmatpush.msra.mxu0 %v240
    %272 = vmatpush.msra.mxu0 %v238
    %273 = vmatpush.msra.mxu0 %v236
    %274 = vmatpush.msra.mxu0 %v234
    %275 = vmatpush.msra.mxu0 %v232
    %276 = vmatpush.msra.mxu0 %v230
    %277 = vmatpush.msra.mxu0 %v228
    %278 = vmatpush.msra.mxu0 %v226
    %279 = vmatpush.msra.mxu0 %v224
    %280 = vmatpush.msra.mxu0 %v222
    %281 = vmatpush.msra.mxu0 %v220
    %282 = vmatpush.msra.mxu0 %v218
    %283 = vmatpush.msra.mxu0 %v216
    %284 = vmatpush.msra.mxu0 %v214
    %285 = vmatpush.msra.mxu0 %v212
    %286 = vmatpush.msra.mxu0 %v210
    %287 = vmatmul.f32.gmra.mxu0 %v175
    %v288 = vpop.f32.mrf.mxu0
    %v289 = vadd.f32 %v266, %v288
    %290 = vmatmul.f32.gmra.mxu0 %v177
    %v291 = vpop.f32.mrf.mxu0
    %v292 = vadd.f32 %v269, %v291
    %293 = vdwg.mxu0
    %294 = vmatpush.msra.mxu0 %v209
    %295 = vmatpush.msra.mxu0 %v207
    %296 = vmatpush.msra.mxu0 %v205
    %297 = vmatpush.msra.mxu0 %v203
    %298 = vmatpush.msra.mxu0 %v201
    %299 = vmatpush.msra.mxu0 %v199
    %300 = vmatpush.msra.mxu0 %v197
    %301 = vmatpush.msra.mxu0 %v195
    %302 = vmatpush.msra.mxu0 %v193
    %303 = vmatpush.msra.mxu0 %v191
    %304 = vmatpush.msra.mxu0 %v189
    %305 = vmatpush.msra.mxu0 %v187
    %306 = vmatpush.msra.mxu0 %v185
    %307 = vmatpush.msra.mxu0 %v183
    %308 = vmatpush.msra.mxu0 %v181
    %309 = vmatpush.msra.mxu0 %v179
    %310 = vmatmul.f32.gmra.mxu0 %v174
    %v311 = vpop.f32.mrf.mxu0
    %v312 = vadd.f32 %v245, %v311
    %313 = vmatmul.f32.gmra.mxu0 %v176
    %v314 = vpop.f32.mrf.mxu0
    %v315 = vadd.f32 %v245, %v314
    %316 = vdwg.mxu0
    %317 = vmatpush.msra.mxu0 %v241
    %318 = vmatpush.msra.mxu0 %v239
    %319 = vmatpush.msra.mxu0 %v237
    %320 = vmatpush.msra.mxu0 %v235
    %321 = vmatpush.msra.mxu0 %v233
    %322 = vmatpush.msra.mxu0 %v231
    %323 = vmatpush.msra.mxu0 %v229
    %324 = vmatpush.msra.mxu0 %v227
    %325 = vmatpush.msra.mxu0 %v225
    %326 = vmatpush.msra.mxu0 %v223
    %327 = vmatpush.msra.mxu0 %v221
    %328 = vmatpush.msra.mxu0 %v219
    %329 = vmatpush.msra.mxu0 %v217
    %330 = vmatpush.msra.mxu0 %v215
    %331 = vmatpush.msra.mxu0 %v213
    %332 = vmatpush.msra.mxu0 %v211
    %333 = vmatmul.f32.gmra.mxu0 %v175
    %v334 = vpop.f32.mrf.mxu0
    %v335 = vadd.f32 %v312, %v334
    %336 = vmatmul.f32.gmra.mxu0 %v177
    %v337 = vpop.f32.mrf.mxu0
    %v338 = vadd.f32 %v315, %v337
    %339 = vdwg.mxu0
    %v340 = vld [vmem:[#allocation9] sm:$0xff]
    %v341 = vld [vmem:[#allocation9 + $0x8] sm:$0xff]
    %v342 = vld [vmem:[#allocation9 + $0x10] sm:$0xff]
    %v343 = vld [vmem:[#allocation9 + $0x18] sm:$0xff]
    %v344 = vld [vmem:[#allocation9 + $0x20] sm:$0xff]
    %v345 = vld [vmem:[#allocation9 + $0x28] sm:$0xff]
    %v346 = vld [vmem:[#allocation9 + $0x30] sm:$0xff]
    %v347 = vld [vmem:[#allocation9 + $0x38] sm:$0xff]
    %v348 = vld [vmem:[#allocation9 + $0x40] sm:$0xff]
    %v349 = vld [vmem:[#allocation9 + $0x48] sm:$0xff]
    %v350 = vld [vmem:[#allocation9 + $0x50] sm:$0xff]
    %v351 = vld [vmem:[#allocation9 + $0x58] sm:$0xff]
    %v352 = vld [vmem:[#allocation9 + $0x60] sm:$0xff]
    %v353 = vld [vmem:[#allocation9 + $0x68] sm:$0xff]
    %v354 = vld [vmem:[#allocation9 + $0x70] sm:$0xff]
    %v355 = vld [vmem:[#allocation9 + $0x78] sm:$0xff]
    %v356 = vld [vmem:[#allocation9 + $0x80] sm:$0xff]
    %v357 = vld [vmem:[#allocation9 + $0x88] sm:$0xff]
    %v358 = vld [vmem:[#allocation9 + $0x90] sm:$0xff]
    %v359 = vld [vmem:[#allocation9 + $0x98] sm:$0xff]
    %v360 = vld [vmem:[#allocation9 + $0xa0] sm:$0xff]
    %v361 = vld [vmem:[#allocation9 + $0xa8] sm:$0xff]
    %v362 = vld [vmem:[#allocation9 + $0xb0] sm:$0xff]
    %v363 = vld [vmem:[#allocation9 + $0xb8] sm:$0xff]
    %v364 = vld [vmem:[#allocation9 + $0xc0] sm:$0xff]
    %v365 = vld [vmem:[#allocation9 + $0xc8] sm:$0xff]
    %v366 = vld [vmem:[#allocation9 + $0xd0] sm:$0xff]
    %v367 = vld [vmem:[#allocation9 + $0xd8] sm:$0xff]
    %v368 = vld [vmem:[#allocation9 + $0xe0] sm:$0xff]
    %v369 = vld [vmem:[#allocation9 + $0xe8] sm:$0xff]
    %v370 = vld [vmem:[#allocation9 + $0xf0] sm:$0xff]
    %v371 = vld [vmem:[#allocation9 + $0xf8] sm:$0xff]
    %v372 = vld [vmem:[#allocation9 + $0x100] sm:$0xff]
    %v373 = vld [vmem:[#allocation9 + $0x108] sm:$0xff]
    %v374 = vld [vmem:[#allocation9 + $0x110] sm:$0xff]
    %v375 = vld [vmem:[#allocation9 + $0x118] sm:$0xff]
    %v376 = vld [vmem:[#allocation9 + $0x120] sm:$0xff]
    %v377 = vld [vmem:[#allocation9 + $0x128] sm:$0xff]
    %v378 = vld [vmem:[#allocation9 + $0x130] sm:$0xff]
    %v379 = vld [vmem:[#allocation9 + $0x138] sm:$0xff]
    %v380 = vld [vmem:[#allocation9 + $0x140] sm:$0xff]
    %v381 = vld [vmem:[#allocation9 + $0x148] sm:$0xff]
    %v382 = vld [vmem:[#allocation9 + $0x150] sm:$0xff]
    %v383 = vld [vmem:[#allocation9 + $0x158] sm:$0xff]
    %v384 = vld [vmem:[#allocation9 + $0x160] sm:$0xff]
    %v385 = vld [vmem:[#allocation9 + $0x168] sm:$0xff]
    %v386 = vld [vmem:[#allocation9 + $0x170] sm:$0xff]
    %v387 = vld [vmem:[#allocation9 + $0x178] sm:$0xff]
    %v388 = vld [vmem:[#allocation9 + $0x180] sm:$0xff]
    %v389 = vld [vmem:[#allocation9 + $0x188] sm:$0xff]
    %v390 = vld [vmem:[#allocation9 + $0x190] sm:$0xff]
    %v391 = vld [vmem:[#allocation9 + $0x198] sm:$0xff]
    %v392 = vld [vmem:[#allocation9 + $0x1a0] sm:$0xff]
    %v393 = vld [vmem:[#allocation9 + $0x1a8] sm:$0xff]
    %v394 = vld [vmem:[#allocation9 + $0x1b0] sm:$0xff]
    %v395 = vld [vmem:[#allocation9 + $0x1b8] sm:$0xff]
    %v396 = vld [vmem:[#allocation9 + $0x1c0] sm:$0xff]
    %v397 = vld [vmem:[#allocation9 + $0x1c8] sm:$0xff]
    %v398 = vld [vmem:[#allocation9 + $0x1d0] sm:$0xff]
    %v399 = vld [vmem:[#allocation9 + $0x1d8] sm:$0xff]
    %v400 = vld [vmem:[#allocation9 + $0x1e0] sm:$0xff]
    %v401 = vld [vmem:[#allocation9 + $0x1e8] sm:$0xff]
    %v402 = vld [vmem:[#allocation9 + $0x1f0] sm:$0xff]
    %v403 = vld [vmem:[#allocation9 + $0x1f8] sm:$0xff]
    %v404 = vld [vmem:[%s5] sm:$0x3]
    %v406 = vperm.slane %v404, 0
    %v407 = vperm.slane %v404, 1
    %410 = vmatpush.msra.mxu0 %v370
    %411 = vmatpush.msra.mxu0 %v368
    %412 = vmatpush.msra.mxu0 %v366
    %413 = vmatpush.msra.mxu0 %v364
    %414 = vmatpush.msra.mxu0 %v362
    %415 = vmatpush.msra.mxu0 %v360
    %416 = vmatpush.msra.mxu0 %v358
    %417 = vmatpush.msra.mxu0 %v356
    %418 = vmatpush.msra.mxu0 %v354
    %419 = vmatpush.msra.mxu0 %v352
    %420 = vmatpush.msra.mxu0 %v350
    %421 = vmatpush.msra.mxu0 %v348
    %422 = vmatpush.msra.mxu0 %v346
    %423 = vmatpush.msra.mxu0 %v344
    %424 = vmatpush.msra.mxu0 %v342
    %425 = vmatpush.msra.mxu0 %v340
    %426 = vmatmul.f32.gmra.mxu0 %v174
    %v427 = vpop.f32.mrf.mxu0
    %v428 = vadd.f32 %v406, %v427
    %429 = vmatmul.f32.gmra.mxu0 %v176
    %v430 = vpop.f32.mrf.mxu0
    %v431 = vadd.f32 %v406, %v430
    %432 = vdwg.mxu0
    %433 = vmatpush.msra.mxu0 %v402
    %434 = vmatpush.msra.mxu0 %v400
    %435 = vmatpush.msra.mxu0 %v398
    %436 = vmatpush.msra.mxu0 %v396
    %437 = vmatpush.msra.mxu0 %v394
    %438 = vmatpush.msra.mxu0 %v392
    %439 = vmatpush.msra.mxu0 %v390
    %440 = vmatpush.msra.mxu0 %v388
    %441 = vmatpush.msra.mxu0 %v386
    %442 = vmatpush.msra.mxu0 %v384
    %443 = vmatpush.msra.mxu0 %v382
    %444 = vmatpush.msra.mxu0 %v380
    %445 = vmatpush.msra.mxu0 %v378
    %446 = vmatpush.msra.mxu0 %v376
    %447 = vmatpush.msra.mxu0 %v374
    %448 = vmatpush.msra.mxu0 %v372
    %449 = vmatmul.f32.gmra.mxu0 %v175
    %v450 = vpop.f32.mrf.mxu0
    %v451 = vadd.f32 %v428, %v450
    %452 = vmatmul.f32.gmra.mxu0 %v177
    %v453 = vpop.f32.mrf.mxu0
    %v454 = vadd.f32 %v431, %v453
    %455 = vdwg.mxu0
    %456 = vmatpush.msra.mxu0 %v371
    %457 = vmatpush.msra.mxu0 %v369
    %458 = vmatpush.msra.mxu0 %v367
    %459 = vmatpush.msra.mxu0 %v365
    %460 = vmatpush.msra.mxu0 %v363
    %461 = vmatpush.msra.mxu0 %v361
    %462 = vmatpush.msra.mxu0 %v359
    %463 = vmatpush.msra.mxu0 %v357
    %464 = vmatpush.msra.mxu0 %v355
    %465 = vmatpush.msra.mxu0 %v353
    %466 = vmatpush.msra.mxu0 %v351
    %467 = vmatpush.msra.mxu0 %v349
    %468 = vmatpush.msra.mxu0 %v347
    %469 = vmatpush.msra.mxu0 %v345
    %470 = vmatpush.msra.mxu0 %v343
    %471 = vmatpush.msra.mxu0 %v341
    %472 = vmatmul.f32.gmra.mxu0 %v174
    %v473 = vpop.f32.mrf.mxu0
    %v474 = vadd.f32 %v407, %v473
    %475 = vmatmul.f32.gmra.mxu0 %v176
    %v476 = vpop.f32.mrf.mxu0
    %v477 = vadd.f32 %v407, %v476
    %478 = vdwg.mxu0
    %479 = vmatpush.msra.mxu0 %v403
    %480 = vmatpush.msra.mxu0 %v401
    %481 = vmatpush.msra.mxu0 %v399
    %482 = vmatpush.msra.mxu0 %v397
    %483 = vmatpush.msra.mxu0 %v395
    %484 = vmatpush.msra.mxu0 %v393
    %485 = vmatpush.msra.mxu0 %v391
    %486 = vmatpush.msra.mxu0 %v389
    %487 = vmatpush.msra.mxu0 %v387
    %488 = vmatpush.msra.mxu0 %v385
    %489 = vmatpush.msra.mxu0 %v383
    %490 = vmatpush.msra.mxu0 %v381
    %491 = vmatpush.msra.mxu0 %v379
    %492 = vmatpush.msra.mxu0 %v377
    %493 = vmatpush.msra.mxu0 %v375
    %494 = vmatpush.msra.mxu0 %v373
    %495 = vmatmul.f32.gmra.mxu0 %v175
    %v496 = vpop.f32.mrf.mxu0
    %v497 = vadd.f32 %v474, %v496
    %498 = vmatmul.f32.gmra.mxu0 %v177
    %v499 = vpop.f32.mrf.mxu0
    %v500 = vadd.f32 %v477, %v499
    %501 = vdwg.mxu0
    %v502 = vmul.f32 %v451, 0.5
    %v503 = vmul.f32 %v497, 0.5
    %v504 = vmul.f32 %v454, 0.5
    %v505 = vmul.f32 %v500, 0.5
    %v506 = vmul.f32 %v451, 0.70710677
    %v507 = vmul.f32 %v497, 0.70710677
    %v508 = vmul.f32 %v454, 0.70710677
    %v509 = vmul.f32 %v500, 0.70710677
    %v510 = vmul.f32 %v506, %v506
    %v511 = vmin.f32 16.0, %v510
    %v512 = vmul.f32 %v511, 2.1237322e-06
    %v513 = vadd.f32 %v512, 0.00028619796
    %v514 = vmul.f32 %v511, %v513
    %v515 = vadd.f32 %v514, 0.0036580483
    %v516 = vmul.f32 %v511, %v515
    %v517 = vadd.f32 %v516, 0.05243302
    %v518 = vmul.f32 %v511, %v517
    %v519 = vadd.f32 %v518, 0.18741608
    %v520 = vmul.f32 %v511, %v519
    %v521 = vadd.f32 %v520, 1.1283791
    %v522 = vmul.f32 %v506, %v521
    %v523 = vmul.f32 %v511, 3.8918573e-05
    %v524 = vadd.f32 %v523, 0.001143296
    %v525 = vmul.f32 %v511, %v524
    %v526 = vadd.f32 %v525, 0.014752088
    %v527 = vmul.f32 %v511, %v526
    %v528 = vadd.f32 %v527, 0.112945676
    %v529 = vmul.f32 %v511, %v528
    %v530 = vadd.f32 %v529, 0.4994258
    %v531 = vmul.f32 %v511, %v530
    %v532 = vadd.f32 %v531, 1.0
    %v533 = vrcp.pop %v532
    %v534 = vmul.f32 %v532, %v533
    %v535 = vsub.f32 1.0, %v534
    %v536 = vmul.f32 %v533, %v535
    %v537 = vadd.f32 %v533, %v536
    %vm538 = vweird.f32 %v532
    %vm539 = vweird.f32 %v533
    %vm540 = vmor %vm538, %vm539
    %v541 = vsel %vm540, %v533, %v537
    %v542 = vand.u32 2147483647, %v532
    %vm543 = vcmp.eq.f32.partialorder %v542, 8.507059e+37
    %v544 = vand.u32 %v532, 2147483648
    %v545 = vor.u32 1.1754944e-38, %v544
    %v546 = vsel %vm543, %v545, %v541
    %v547 = vmul.f32 %v522, %v546
    %v548 = vmin.f32 %v547, 1.0
    %v549 = vmax.f32 %v548, -1.0
    %v550 = vmul.f32 %v507, %v507
    %v551 = vmin.f32 16.0, %v550
    %v552 = vmul.f32 %v551, 2.1237322e-06
    %v553 = vadd.f32 %v552, 0.00028619796
    %v554 = vmul.f32 %v551, %v553
    %v555 = vadd.f32 %v554, 0.0036580483
    %v556 = vmul.f32 %v551, %v555
    %v557 = vadd.f32 %v556, 0.05243302
    %v558 = vmul.f32 %v551, %v557
    %v559 = vadd.f32 %v558, 0.18741608
    %v560 = vmul.f32 %v551, %v559
    %v561 = vadd.f32 %v560, 1.1283791
    %v562 = vmul.f32 %v507, %v561
    %v563 = vmul.f32 %v551, 3.8918573e-05
    %v564 = vadd.f32 %v563, 0.001143296
    %v565 = vmul.f32 %v551, %v564
    %v566 = vadd.f32 %v565, 0.014752088
    %v567 = vmul.f32 %v551, %v566
    %v568 = vadd.f32 %v567, 0.112945676
    %v569 = vmul.f32 %v551, %v568
    %v570 = vadd.f32 %v569, 0.4994258
    %v571 = vmul.f32 %v551, %v570
    %v572 = vadd.f32 %v571, 1.0
    %v573 = vrcp.pop %v572
    %v574 = vmul.f32 %v572, %v573
    %v575 = vsub.f32 1.0, %v574
    %v576 = vmul.f32 %v573, %v575
    %v577 = vadd.f32 %v573, %v576
    %vm578 = vweird.f32 %v572
    %vm579 = vweird.f32 %v573
    %vm580 = vmor %vm578, %vm579
    %v581 = vsel %vm580, %v573, %v577
    %v582 = vand.u32 2147483647, %v572
    %vm583 = vcmp.eq.f32.partialorder %v582, 8.507059e+37
    %v584 = vand.u32 %v572, 2147483648
    %v585 = vor.u32 1.1754944e-38, %v584
    %v586 = vsel %vm583, %v585, %v581
    %v587 = vmul.f32 %v562, %v586
    %v588 = vmin.f32 %v587, 1.0
    %v589 = vmax.f32 %v588, -1.0
    %v590 = vmul.f32 %v508, %v508
    %v591 = vmin.f32 16.0, %v590
    %v592 = vmul.f32 %v591, 2.1237322e-06
    %v593 = vadd.f32 %v592, 0.00028619796
    %v594 = vmul.f32 %v591, %v593
    %v595 = vadd.f32 %v594, 0.0036580483
    %v596 = vmul.f32 %v591, %v595
    %v597 = vadd.f32 %v596, 0.05243302
    %v598 = vmul.f32 %v591, %v597
    %v599 = vadd.f32 %v598, 0.18741608
    %v600 = vmul.f32 %v591, %v599
    %v601 = vadd.f32 %v600, 1.1283791
    %v602 = vmul.f32 %v508, %v601
    %v603 = vmul.f32 %v591, 3.8918573e-05
    %v604 = vadd.f32 %v603, 0.001143296
    %v605 = vmul.f32 %v591, %v604
    %v606 = vadd.f32 %v605, 0.014752088
    %v607 = vmul.f32 %v591, %v606
    %v608 = vadd.f32 %v607, 0.112945676
    %v609 = vmul.f32 %v591, %v608
    %v610 = vadd.f32 %v609, 0.4994258
    %v611 = vmul.f32 %v591, %v610
    %v612 = vadd.f32 %v611, 1.0
    %v613 = vrcp.pop %v612
    %v614 = vmul.f32 %v612, %v613
    %v615 = vsub.f32 1.0, %v614
    %v616 = vmul.f32 %v613, %v615
    %v617 = vadd.f32 %v613, %v616
    %vm618 = vweird.f32 %v612
    %vm619 = vweird.f32 %v613
    %vm620 = vmor %vm618, %vm619
    %v621 = vsel %vm620, %v613, %v617
    %v622 = vand.u32 2147483647, %v612
    %vm623 = vcmp.eq.f32.partialorder %v622, 8.507059e+37
    %v624 = vand.u32 %v612, 2147483648
    %v625 = vor.u32 1.1754944e-38, %v624
    %v626 = vsel %vm623, %v625, %v621
    %v627 = vmul.f32 %v602, %v626
    %v628 = vmin.f32 %v627, 1.0
    %v629 = vmax.f32 %v628, -1.0
    %v630 = vmul.f32 %v509, %v509
    %v631 = vmin.f32 16.0, %v630
    %v632 = vmul.f32 %v631, 2.1237322e-06
    %v633 = vadd.f32 %v632, 0.00028619796
    %v634 = vmul.f32 %v631, %v633
    %v635 = vadd.f32 %v634, 0.0036580483
    %v636 = vmul.f32 %v631, %v635
    %v637 = vadd.f32 %v636, 0.05243302
    %v638 = vmul.f32 %v631, %v637
    %v639 = vadd.f32 %v638, 0.18741608
    %v640 = vmul.f32 %v631, %v639
    %v641 = vadd.f32 %v640, 1.1283791
    %v642 = vmul.f32 %v509, %v641
    %v643 = vmul.f32 %v631, 3.8918573e-05
    %v644 = vadd.f32 %v643, 0.001143296
    %v645 = vmul.f32 %v631, %v644
    %v646 = vadd.f32 %v645, 0.014752088
    %v647 = vmul.f32 %v631, %v646
    %v648 = vadd.f32 %v647, 0.112945676
    %v649 = vmul.f32 %v631, %v648
    %v650 = vadd.f32 %v649, 0.4994258
    %v651 = vmul.f32 %v631, %v650
    %v652 = vadd.f32 %v651, 1.0
    %v653 = vrcp.pop %v652
    %v654 = vmul.f32 %v652, %v653
    %v655 = vsub.f32 1.0, %v654
    %v656 = vmul.f32 %v653, %v655
    %v657 = vadd.f32 %v653, %v656
    %vm658 = vweird.f32 %v652
    %vm659 = vweird.f32 %v653
    %vm660 = vmor %vm658, %vm659
    %v661 = vsel %vm660, %v653, %v657
    %v662 = vand.u32 2147483647, %v652
    %vm663 = vcmp.eq.f32.partialorder %v662, 8.507059e+37
    %v664 = vand.u32 %v652, 2147483648
    %v665 = vor.u32 1.1754944e-38, %v664
    %v666 = vsel %vm663, %v665, %v661
    %v667 = vmul.f32 %v642, %v666
    %v668 = vmin.f32 %v667, 1.0
    %v669 = vmax.f32 %v668, -1.0
    %v670 = vadd.f32 %v549, 1.0
    %v671 = vadd.f32 %v589, 1.0
    %v672 = vadd.f32 %v629, 1.0
    %v673 = vadd.f32 %v669, 1.0
    %v674 = vmul.f32 %v502, %v670
    %v675 = vmul.f32 %v503, %v671
    %v676 = vmul.f32 %v504, %v672
    %v677 = vmul.f32 %v505, %v673
    %v678 = vmul.f32 %v289, %v674
    %v679 = vmul.f32 %v335, %v675
    %v680 = vmul.f32 %v292, %v676
    %v681 = vmul.f32 %v338, %v677
    %682 = vst [vmem:[#allocation11] sm:$0xff] %v678
    %683 = vst [vmem:[#allocation11 + $0x8] sm:$0xff] %v679
    %684 = vst [vmem:[#allocation11 + $0x10] sm:$0xff] %v680
    %685 = vst [vmem:[#allocation11 + $0x18] sm:$0xff] %v681
    // Predicated region
    $region46: #{tpu_custom_call.1} parent=1 // pred_check
      _
    $region47: #{tpu_custom_call.1} parent=1 // pred_check_branch
      %687 = sbr.rel (0) target = $region49
    $region48: #{tpu_custom_call.1} parent=1 // pred_region
      %689 = vsyncadd [#allocation5], 0
      %s690 = sshll.u32 [#allocation11], 4
      %s691 = int_to_ptr.vmem [resolvable:$true] %s690
      %s692 = sshll.u32 %s6, 4
      %s693 = int_to_ptr.hbm [resolvable:$true] %s692
      %698 = dma.vmem_to_hbm [thread:$0]  %s691, 512, %s693, [#allocation5], 256, 256, 16
    $region49: #{tpu_custom_call.1} parent=1 // pred_fallthru
      _
    // Predicated region
    $region50: #{tpu_custom_call.1} parent=1 // pred_check
      _
    $region51: #{tpu_custom_call.1} parent=1 // pred_check_branch
      %700 = sbr.rel (0) target = $region53
    $region52: #{tpu_custom_call.1} parent=1 // pred_region
      %702 = dma.done [#allocation5], 512
    $region53: #{tpu_custom_call.1} parent=1 // pred_fallthru
      _
    %703 = vsyncpa [#allocation4], 1
    %704 = vsyncpa [#allocation7], 1
    %705 = vsyncpa [#allocation10], 1
    %706 = vsyncpa [#allocation5], 1

</llo_original>
